<compile_context>
chip_gen: v7x
topology: tpu7x:2x2x1
jax: 0.10.0
libtpu: 0.0.40
codegen_flags: <defaults>
</compile_context>

<pallas_src>
import functools

import jax
import jax.numpy as jnp
from jax import lax
from jax.experimental import pallas as pl
from jax.experimental.pallas import tpu as pltpu

_LPAD = 8  # left pad width inside the scratch band; keeps every scratch store sublane-aligned


def _sepconv_band_kernel(top_ref, x_ref, bot_ref, w_ref, b_ref, o_ref, band_ref,
                         *, TH, W, Cin, Cout, compute_dtype):
    # top_ref : (1, 1, W, Cin)    input row  band_start - 1  (clamped; masked below)
    # x_ref   : (1, TH, W, Cin)   input rows [band_start, band_start + TH)
    # bot_ref : (1, 1, W, Cin)    input row  band_start + TH (clamped; masked below)
    # w_ref   : (9, Cin, Cout)    fused (depthwise x pointwise x BN-scale) weights, tap-major
    # b_ref   : (1, Cout)         fused bias (conv biases + BN shift), f32
    # o_ref   : (1, TH, W, Cout)  output band
    # band_ref: (TH+2, W+16, Cin) scratch: zero-padded input band (H halo + W padding)
    b = pl.program_id(1)
    nb = pl.num_programs(1)

    top = top_ref[0, 0]                          # (W, Cin)
    bot = bot_ref[0, 0]                          # (W, Cin)
    zrow = jnp.zeros_like(top)
    top = jnp.where(b > 0, top, zrow)            # zero-pad above the image
    bot = jnp.where(b < nb - 1, bot, zrow)       # zero-pad below the image

    # Assemble the zero-padded band in VMEM.  Image columns live at [_LPAD, _LPAD+W);
    # column _LPAD-1 and column _LPAD+W are the conv zero padding.  The two 8-wide
    # zero stores and the data stores are all sublane-aligned.
    zpad = jnp.zeros((TH + 2, _LPAD, Cin), dtype=band_ref.dtype)
    band_ref[:, 0:_LPAD, :] = zpad
    band_ref[:, _LPAD + W:_LPAD + W + 8, :] = zpad
    band_ref[0, _LPAD:_LPAD + W, :] = top
    band_ref[1:TH + 1, _LPAD:_LPAD + W, :] = x_ref[0]
    band_ref[TH + 1, _LPAD:_LPAD + W, :] = bot

    # Depthwise 3x3 + pointwise 1x1 (+ BN scale) fused on the MXU: accumulate the
    # nine taps' (TH*W, Cin) @ (Cin, Cout) contributions in float32.
    acc = jnp.zeros((TH * W, Cout), dtype=jnp.float32)
    for dh in range(3):
        for dw in range(3):
            tap = band_ref[dh:dh + TH, _LPAD - 1 + dw:_LPAD - 1 + dw + W, :]  # (TH, W, Cin)
            tap = tap.reshape(TH * W, Cin).astype(compute_dtype)
            acc = acc + jnp.dot(tap, w_ref[dh * 3 + dw],
                                preferred_element_type=jnp.float32)

    z = acc + b_ref[0]                           # fused conv bias + BN shift
    y = z * jax.nn.sigmoid(z)                    # SiLU (sigmoid runs on the EUP)
    o_ref[0] = y.reshape(TH, W, Cout).astype(o_ref.dtype)


def _pick_band_rows(H, W, cin, cout, itemsize=4, budget_bytes=12 << 20):
    """Largest divisor of H whose per-step footprint fits the VMEM budget, preferring
    at least 2 bands so the software pipeline / v7x megacore have work to overlap."""
    divs = [d for d in range(1, H + 1) if H % d == 0]

    def cost(th):
        band = (th + 2) * (W + 16) * cin * itemsize            # scratch band
        io = th * W * (2 * cin + 2 * cout) * itemsize          # double-buffered in/out blocks
        tmp = th * W * (2 * cin + 2 * cout) * itemsize         # live tap / acc temporaries
        return band + io + tmp

    fitting = [d for d in divs if cost(d) <= budget_bytes]
    if not fitting:
        return 1
    multi = [d for d in fitting if H // d >= 2]
    return max(multi) if multi else max(fitting)


def separable_conv2d_nhwc(x_nhwc, w_dw, b_dw, w_pw, b_pw,
                          bn_gamma, bn_beta, bn_mean, bn_var,
                          eps=1e-5, band_rows=None, compute_dtype=jnp.float32):
    """NHWC-native fused SeparableConv2d (stride=1) + BatchNorm2d(eval) + SiLU.

    x_nhwc: (N, H, W, Cin).  Weights follow PyTorch conventions:
      w_dw: (Cin, 1, 3, 3), b_dw: (Cin,), w_pw: (Cout, Cin, 1, 1), b_pw: (Cout,).
    """
    N, H, W, Cin = x_nhwc.shape
    Cout = w_pw.shape[0]

    # ---- fold depthwise x pointwise x BN-scale into one (9, Cin, Cout) weight ----
    bn_scale = bn_gamma / jnp.sqrt(bn_var + eps)                         # (Cout,)
    wdw = jnp.transpose(w_dw[:, 0, :, :], (1, 2, 0)).reshape(9, Cin)     # [tap, cin]
    wpw = jnp.transpose(w_pw[:, :, 0, 0], (1, 0))                        # (Cin, Cout)
    w_fused = (wdw[:, :, None] * wpw[None, :, :]) * bn_scale[None, None, :]
    w_fused = w_fused.astype(compute_dtype)                              # (9, Cin, Cout)
    # bias: (pointwise bias + pointwise(depthwise bias)) pushed through BN
    conv_bias = b_pw + b_dw @ wpw                                        # (Cout,)
    bias_fused = ((conv_bias - bn_mean) * bn_scale + bn_beta).reshape(1, Cout)
    bias_fused = bias_fused.astype(jnp.float32)

    if band_rows is None:
        band_rows = _pick_band_rows(H, W, Cin, Cout)
    if H % band_rows != 0:
        raise ValueError(f"band_rows={band_rows} must divide H={H}")
    TH = band_rows
    nb = H // TH

    kernel = functools.partial(_sepconv_band_kernel, TH=TH, W=W, Cin=Cin, Cout=Cout,
                               compute_dtype=compute_dtype)

    out = pl.pallas_call(
        kernel,
        out_shape=jax.ShapeDtypeStruct((N, H, W, Cout), x_nhwc.dtype),
        grid_spec=pltpu.PrefetchScalarGridSpec(
            num_scalar_prefetch=0,
            grid=(N, nb),
            in_specs=[
                # one-row halo above / the band itself / one-row halo below
                # (block size 1 along H => block index == row index; clamped at edges,
                #  the clamped row is masked to zero inside the kernel)
                pl.BlockSpec((1, 1, W, Cin),
                             lambda n, b: (n, jnp.maximum(b * TH - 1, 0), 0, 0)),
                # If DMA remains exposed for very shallow bands, this spec could use
                # pipeline_mode=pl.Buffered(3) to deepen input pipelining.
                pl.BlockSpec((1, TH, W, Cin), lambda n, b: (n, b, 0, 0)),
                pl.BlockSpec((1, 1, W, Cin),
                             lambda n, b: (n, jnp.minimum((b + 1) * TH, H - 1), 0, 0)),
                pl.BlockSpec((9, Cin, Cout), lambda n, b: (0, 0, 0)),
                pl.BlockSpec((1, Cout), lambda n, b: (0, 0)),
            ],
            out_specs=pl.BlockSpec((1, TH, W, Cout), lambda n, b: (n, b, 0, 0)),
            scratch_shapes=[pltpu.VMEM((TH + 2, W + 16, Cin), x_nhwc.dtype)],
        ),
        compiler_params=pltpu.CompilerParams(
            # batch axis and row-band axis are both independent -> megacore-shardable (v7x)
            dimension_semantics=("parallel", "parallel"),
            # explicit scoped-VMEM budget; the band chooser keeps the per-step footprint
            # well under this, which fits v5e / v6e / v7x alike.
            vmem_limit_bytes=32 * 1024 * 1024,
        ),
    )(x_nhwc, x_nhwc, x_nhwc, w_fused, bias_fused)
    return out


def separable_conv2d(x_nchw, w_dw, b_dw, w_pw, b_pw,
                     bn_gamma, bn_beta, bn_mean, bn_var,
                     eps=1e-5, band_rows=None, compute_dtype=jnp.float32):
    """PyTorch-parity entry point (NCHW in / NCHW out).

    NOTE(perf): the two transposes below are pure layout glue for PyTorch parity.
    A production pipeline should call `separable_conv2d_nhwc` directly and stay
    NHWC end-to-end so these HBM round trips disappear.
    """
    x_nhwc = jnp.transpose(x_nchw, (0, 2, 3, 1))
    out = separable_conv2d_nhwc(x_nhwc, w_dw, b_dw, w_pw, b_pw,
                                bn_gamma, bn_beta, bn_mean, bn_var,
                                eps=eps, band_rows=band_rows,
                                compute_dtype=compute_dtype)
    return jnp.transpose(out, (0, 3, 1, 2))


def _reference(x, w_dw, b_dw, w_pw, b_pw, g, b, m, v, eps=1e-5):
    # pure-JAX reference (NCHW, matches PyTorch conv semantics)
    Cin = x.shape[1]
    y = lax.conv_general_dilated(x, w_dw, window_strides=(1, 1), padding=((1, 1), (1, 1)),
                                 feature_group_count=Cin,
                                 dimension_numbers=("NCHW", "OIHW", "NCHW"))
    y = y + b_dw[None, :, None, None]
    y = lax.conv_general_dilated(y, w_pw, window_strides=(1, 1), padding="VALID",
                                 dimension_numbers=("NCHW", "OIHW", "NCHW"))
    y = y + b_pw[None, :, None, None]
    y = (y - m[None, :, None, None]) / jnp.sqrt(v[None, :, None, None] + eps)
    y = y * g[None, :, None, None] + b[None, :, None, None]
    return y * jax.nn.sigmoid(y)


if __name__ == "__main__":
    key = jax.random.PRNGKey(0)
    N, Cin, Cout, H, W = 2, 4, 8, 16, 16
    ks = jax.random.split(key, 8)

    x = jax.random.normal(ks[0], (N, Cin, H, W), dtype=jnp.float32)
    w_dw = jax.random.normal(ks[1], (Cin, 1, 3, 3), dtype=jnp.float32) * 0.2
    b_dw = jax.random.normal(ks[2], (Cin,), dtype=jnp.float32) * 0.1
    w_pw = jax.random.normal(ks[3], (Cout, Cin, 1, 1), dtype=jnp.float32) * 0.2
    b_pw = jax.random.normal(ks[4], (Cout,), dtype=jnp.float32) * 0.1
    bn_gamma = 1.0 + 0.1 * jax.random.normal(ks[5], (Cout,), dtype=jnp.float32)
    bn_beta = 0.1 * jax.random.normal(ks[6], (Cout,), dtype=jnp.float32)
    bn_mean = 0.05 * jax.random.normal(ks[7], (Cout,), dtype=jnp.float32)
    bn_var = jnp.abs(1.0 + 0.1 * jax.random.normal(ks[5], (Cout,), dtype=jnp.float32))

    ref = _reference(x, w_dw, b_dw, w_pw, b_pw, bn_gamma, bn_beta, bn_mean, bn_var)

    # f32 path (numerical parity with the PyTorch module)
    out = separable_conv2d(x, w_dw, b_dw, w_pw, b_pw, bn_gamma, bn_beta, bn_mean, bn_var)
    out = jax.block_until_ready(out)
    assert out.shape == (N, Cout, H, W)
    err = float(jnp.max(jnp.abs(out - ref)))
    assert jnp.allclose(out, ref, atol=1e-3, rtol=1e-3), err

    # bf16-MXU path (v6e/v7x fast path): same semantics, bf16 operand rounding.
    out_bf16 = separable_conv2d(x, w_dw, b_dw, w_pw, b_pw, bn_gamma, bn_beta,
                                bn_mean, bn_var, compute_dtype=jnp.bfloat16)
    out_bf16 = jax.block_until_ready(out_bf16)
    err16 = float(jnp.max(jnp.abs(out_bf16 - ref)))
    assert jnp.allclose(out_bf16, ref, atol=5e-2, rtol=5e-2), err16

    print("KERNEL_OK")
</pallas_src>

<mosaic_0001>
module attributes {stable_mosaic.version = 11 : i64} {
  func.func @_sepconv_band_kernel(%arg0: i32, %arg1: i32, %arg2: memref<1x1x16x4xf32, #tpu.memory_space<vmem>>, %arg3: memref<1x8x16x4xf32, #tpu.memory_space<vmem>>, %arg4: memref<1x1x16x4xf32, #tpu.memory_space<vmem>>, %arg5: memref<9x4x8xf32, #tpu.memory_space<vmem>>, %arg6: memref<1x8xf32, #tpu.memory_space<vmem>>, %arg7: memref<1x8x16x8xf32, #tpu.memory_space<vmem>>, %arg8: memref<10x32x4xf32, #tpu.memory_space<vmem>>) attributes {dimension_semantics = [#tpu.dimension_semantics<parallel>, #tpu.dimension_semantics<parallel>], iteration_bounds = array<i64: 2, 2>, scalar_prefetch = 0 : i64, scratch_operands = 1 : i64, tpu.core_type = #tpu.core_type<tc>, window_params = [{transform_indices = @transform_0, window_bounds = array<i64: 1, 1, 16, 4>}, {transform_indices = @transform_1, window_bounds = array<i64: 1, 8, 16, 4>}, {transform_indices = @transform_2, window_bounds = array<i64: 1, 1, 16, 4>}, {pipeline_mode = #tpu.pipeline_mode<synchronous>, transform_indices = @transform_3, window_bounds = array<i64: 9, 4, 8>}, {pipeline_mode = #tpu.pipeline_mode<synchronous>, transform_indices = @transform_4, window_bounds = array<i64: 1, 8>}, {transform_indices = @transform_5, window_bounds = array<i64: 1, 8, 16, 8>}]} {
    %c0 = arith.constant 0 : index
    %c0_0 = arith.constant 0 : index
    %c0_1 = arith.constant 0 : index
    %c0_2 = arith.constant 0 : index
    %0 = vector.load %arg2[%c0, %c0_0, %c0_1, %c0_2] : memref<1x1x16x4xf32, #tpu.memory_space<vmem>>, vector<1x1x16x4xf32>
    %1 = vector.shape_cast %0 : vector<1x1x16x4xf32> to vector<16x4xf32>
    %c0_3 = arith.constant 0 : index
    %c0_4 = arith.constant 0 : index
    %c0_5 = arith.constant 0 : index
    %c0_6 = arith.constant 0 : index
    %2 = vector.load %arg4[%c0_3, %c0_4, %c0_5, %c0_6] : memref<1x1x16x4xf32, #tpu.memory_space<vmem>>, vector<1x1x16x4xf32>
    %3 = vector.shape_cast %2 : vector<1x1x16x4xf32> to vector<16x4xf32>
    %cst = arith.constant 0.000000e+00 : f32
    %4 = vector.broadcast %cst : f32 to vector<16x4xf32>
    %c0_i32 = arith.constant 0 : i32
    %5 = arith.cmpi sgt, %arg1, %c0_i32 : i32
    %6 = arith.select %5, %1, %4 : vector<16x4xf32>
    %c1_i32 = arith.constant 1 : i32
    %7 = arith.cmpi slt, %arg1, %c1_i32 : i32
    %8 = arith.select %7, %3, %4 : vector<16x4xf32>
    %cst_7 = arith.constant 0.000000e+00 : f32
    %9 = vector.broadcast %cst_7 : f32 to vector<10x8x4xf32>
    %c0_8 = arith.constant 0 : index
    %c0_9 = arith.constant 0 : index
    %c0_10 = arith.constant 0 : index
    %10 = vector.load %arg8[%c0_8, %c0_9, %c0_10] : memref<10x32x4xf32, #tpu.memory_space<vmem>>, vector<10x8x4xf32>
    tpu.vector_store %arg8[%c0_8, %c0_9, %c0_10], %9 {strides = array<i32>} : memref<10x32x4xf32, #tpu.memory_space<vmem>>, vector<10x8x4xf32>,
    %c0_11 = arith.constant 0 : index
    %c24 = arith.constant 24 : index
    %c0_12 = arith.constant 0 : index
    %11 = vector.load %arg8[%c0_11, %c24, %c0_12] : memref<10x32x4xf32, #tpu.memory_space<vmem>>, vector<10x8x4xf32>
    tpu.vector_store %arg8[%c0_11, %c24, %c0_12], %9 {strides = array<i32>} : memref<10x32x4xf32, #tpu.memory_space<vmem>>, vector<10x8x4xf32>,
    %c0_13 = arith.constant 0 : index
    %c8 = arith.constant 8 : index
    %c0_14 = arith.constant 0 : index
    %12 = vector.load %arg8[%c0_13, %c8, %c0_14] : memref<10x32x4xf32, #tpu.memory_space<vmem>>, vector<1x16x4xf32>
    %13 = vector.shape_cast %12 : vector<1x16x4xf32> to vector<16x4xf32>
    %14 = vector.shape_cast %6 : vector<16x4xf32> to vector<1x16x4xf32>
    tpu.vector_store %arg8[%c0_13, %c8, %c0_14], %14 {strides = array<i32>} : memref<10x32x4xf32, #tpu.memory_space<vmem>>, vector<1x16x4xf32>,
    %c0_15 = arith.constant 0 : index
    %c0_16 = arith.constant 0 : index
    %c0_17 = arith.constant 0 : index
    %c0_18 = arith.constant 0 : index
    %15 = vector.load %arg3[%c0_15, %c0_16, %c0_17, %c0_18] : memref<1x8x16x4xf32, #tpu.memory_space<vmem>>, vector<1x8x16x4xf32>
    %16 = vector.shape_cast %15 : vector<1x8x16x4xf32> to vector<8x16x4xf32>
    %c1 = arith.constant 1 : index
    %c8_19 = arith.constant 8 : index
    %c0_20 = arith.constant 0 : index
    %17 = vector.load %arg8[%c1, %c8_19, %c0_20] : memref<10x32x4xf32, #tpu.memory_space<vmem>>, vector<8x16x4xf32>
    tpu.vector_store %arg8[%c1, %c8_19, %c0_20], %16 {strides = array<i32>} : memref<10x32x4xf32, #tpu.memory_space<vmem>>, vector<8x16x4xf32>,
    %c9 = arith.constant 9 : index
    %c8_21 = arith.constant 8 : index
    %c0_22 = arith.constant 0 : index
    %18 = vector.load %arg8[%c9, %c8_21, %c0_22] : memref<10x32x4xf32, #tpu.memory_space<vmem>>, vector<1x16x4xf32>
    %19 = vector.shape_cast %18 : vector<1x16x4xf32> to vector<16x4xf32>
    %20 = vector.shape_cast %8 : vector<16x4xf32> to vector<1x16x4xf32>
    tpu.vector_store %arg8[%c9, %c8_21, %c0_22], %20 {strides = array<i32>} : memref<10x32x4xf32, #tpu.memory_space<vmem>>, vector<1x16x4xf32>,
    %cst_23 = arith.constant 0.000000e+00 : f32
    %21 = vector.broadcast %cst_23 : f32 to vector<128x8xf32>
    %c0_24 = arith.constant 0 : index
    %c7 = arith.constant 7 : index
    %c0_25 = arith.constant 0 : index
    %22 = vector.load %arg8[%c0_24, %c7, %c0_25] : memref<10x32x4xf32, #tpu.memory_space<vmem>>, vector<8x16x4xf32>
    %23 = vector.shape_cast %22 : vector<8x16x4xf32> to vector<128x4xf32>
    %c0_26 = arith.constant 0 : index
    %c0_27 = arith.constant 0 : index
    %c0_28 = arith.constant 0 : index
    %24 = vector.load %arg5[%c0_26, %c0_27, %c0_28] : memref<9x4x8xf32, #tpu.memory_space<vmem>>, vector<1x4x8xf32>
    %25 = vector.shape_cast %24 : vector<1x4x8xf32> to vector<4x8xf32>
    %cst_29 = arith.constant dense<0.000000e+00> : vector<128x8xf32>
    %26 = tpu.matmul %23, %25, %cst_29 {dimension_numbers = #tpu.dot_dimension_numbers<[1], [0], [0], [1], [0, 0, 1, 1], [], []>} : vector<128x4xf32>, vector<4x8xf32>, vector<128x8xf32> -> vector<128x8xf32>
    %27 = arith.addf %21, %26 : vector<128x8xf32>
    %c0_30 = arith.constant 0 : index
    %c8_31 = arith.constant 8 : index
    %c0_32 = arith.constant 0 : index
    %28 = vector.load %arg8[%c0_30, %c8_31, %c0_32] : memref<10x32x4xf32, #tpu.memory_space<vmem>>, vector<8x16x4xf32>
    %29 = vector.shape_cast %28 : vector<8x16x4xf32> to vector<128x4xf32>
    %c1_33 = arith.constant 1 : index
    %c0_34 = arith.constant 0 : index
    %c0_35 = arith.constant 0 : index
    %30 = vector.load %arg5[%c1_33, %c0_34, %c0_35] : memref<9x4x8xf32, #tpu.memory_space<vmem>>, vector<1x4x8xf32>
    %31 = vector.shape_cast %30 : vector<1x4x8xf32> to vector<4x8xf32>
    %cst_36 = arith.constant dense<0.000000e+00> : vector<128x8xf32>
    %32 = tpu.matmul %29, %31, %cst_36 {dimension_numbers = #tpu.dot_dimension_numbers<[1], [0], [0], [1], [0, 0, 1, 1], [], []>} : vector<128x4xf32>, vector<4x8xf32>, vector<128x8xf32> -> vector<128x8xf32>
    %33 = arith.addf %27, %32 : vector<128x8xf32>
    %c0_37 = arith.constant 0 : index
    %c9_38 = arith.constant 9 : index
    %c0_39 = arith.constant 0 : index
    %34 = vector.load %arg8[%c0_37, %c9_38, %c0_39] : memref<10x32x4xf32, #tpu.memory_space<vmem>>, vector<8x16x4xf32>
    %35 = vector.shape_cast %34 : vector<8x16x4xf32> to vector<128x4xf32>
    %c2 = arith.constant 2 : index
    %c0_40 = arith.constant 0 : index
    %c0_41 = arith.constant 0 : index
    %36 = vector.load %arg5[%c2, %c0_40, %c0_41] : memref<9x4x8xf32, #tpu.memory_space<vmem>>, vector<1x4x8xf32>
    %37 = vector.shape_cast %36 : vector<1x4x8xf32> to vector<4x8xf32>
    %cst_42 = arith.constant dense<0.000000e+00> : vector<128x8xf32>
    %38 = tpu.matmul %35, %37, %cst_42 {dimension_numbers = #tpu.dot_dimension_numbers<[1], [0], [0], [1], [0, 0, 1, 1], [], []>} : vector<128x4xf32>, vector<4x8xf32>, vector<128x8xf32> -> vector<128x8xf32>
    %39 = arith.addf %33, %38 : vector<128x8xf32>
    %c1_43 = arith.constant 1 : index
    %c7_44 = arith.constant 7 : index
    %c0_45 = arith.constant 0 : index
    %40 = vector.load %arg8[%c1_43, %c7_44, %c0_45] : memref<10x32x4xf32, #tpu.memory_space<vmem>>, vector<8x16x4xf32>
    %41 = vector.shape_cast %40 : vector<8x16x4xf32> to vector<128x4xf32>
    %c3 = arith.constant 3 : index
    %c0_46 = arith.constant 0 : index
    %c0_47 = arith.constant 0 : index
    %42 = vector.load %arg5[%c3, %c0_46, %c0_47] : memref<9x4x8xf32, #tpu.memory_space<vmem>>, vector<1x4x8xf32>
    %43 = vector.shape_cast %42 : vector<1x4x8xf32> to vector<4x8xf32>
    %cst_48 = arith.constant dense<0.000000e+00> : vector<128x8xf32>
    %44 = tpu.matmul %41, %43, %cst_48 {dimension_numbers = #tpu.dot_dimension_numbers<[1], [0], [0], [1], [0, 0, 1, 1], [], []>} : vector<128x4xf32>, vector<4x8xf32>, vector<128x8xf32> -> vector<128x8xf32>
    %45 = arith.addf %39, %44 : vector<128x8xf32>
    %c1_49 = arith.constant 1 : index
    %c8_50 = arith.constant 8 : index
    %c0_51 = arith.constant 0 : index
    %46 = vector.load %arg8[%c1_49, %c8_50, %c0_51] : memref<10x32x4xf32, #tpu.memory_space<vmem>>, vector<8x16x4xf32>
    %47 = vector.shape_cast %46 : vector<8x16x4xf32> to vector<128x4xf32>
    %c4 = arith.constant 4 : index
    %c0_52 = arith.constant 0 : index
    %c0_53 = arith.constant 0 : index
    %48 = vector.load %arg5[%c4, %c0_52, %c0_53] : memref<9x4x8xf32, #tpu.memory_space<vmem>>, vector<1x4x8xf32>
    %49 = vector.shape_cast %48 : vector<1x4x8xf32> to vector<4x8xf32>
    %cst_54 = arith.constant dense<0.000000e+00> : vector<128x8xf32>
    %50 = tpu.matmul %47, %49, %cst_54 {dimension_numbers = #tpu.dot_dimension_numbers<[1], [0], [0], [1], [0, 0, 1, 1], [], []>} : vector<128x4xf32>, vector<4x8xf32>, vector<128x8xf32> -> vector<128x8xf32>
    %51 = arith.addf %45, %50 : vector<128x8xf32>
    %c1_55 = arith.constant 1 : index
    %c9_56 = arith.constant 9 : index
    %c0_57 = arith.constant 0 : index
    %52 = vector.load %arg8[%c1_55, %c9_56, %c0_57] : memref<10x32x4xf32, #tpu.memory_space<vmem>>, vector<8x16x4xf32>
    %53 = vector.shape_cast %52 : vector<8x16x4xf32> to vector<128x4xf32>
    %c5 = arith.constant 5 : index
    %c0_58 = arith.constant 0 : index
    %c0_59 = arith.constant 0 : index
    %54 = vector.load %arg5[%c5, %c0_58, %c0_59] : memref<9x4x8xf32, #tpu.memory_space<vmem>>, vector<1x4x8xf32>
    %55 = vector.shape_cast %54 : vector<1x4x8xf32> to vector<4x8xf32>
    %cst_60 = arith.constant dense<0.000000e+00> : vector<128x8xf32>
    %56 = tpu.matmul %53, %55, %cst_60 {dimension_numbers = #tpu.dot_dimension_numbers<[1], [0], [0], [1], [0, 0, 1, 1], [], []>} : vector<128x4xf32>, vector<4x8xf32>, vector<128x8xf32> -> vector<128x8xf32>
    %57 = arith.addf %51, %56 : vector<128x8xf32>
    %c2_61 = arith.constant 2 : index
    %c7_62 = arith.constant 7 : index
    %c0_63 = arith.constant 0 : index
    %58 = vector.load %arg8[%c2_61, %c7_62, %c0_63] : memref<10x32x4xf32, #tpu.memory_space<vmem>>, vector<8x16x4xf32>
    %59 = vector.shape_cast %58 : vector<8x16x4xf32> to vector<128x4xf32>
    %c6 = arith.constant 6 : index
    %c0_64 = arith.constant 0 : index
    %c0_65 = arith.constant 0 : index
    %60 = vector.load %arg5[%c6, %c0_64, %c0_65] : memref<9x4x8xf32, #tpu.memory_space<vmem>>, vector<1x4x8xf32>
    %61 = vector.shape_cast %60 : vector<1x4x8xf32> to vector<4x8xf32>
    %cst_66 = arith.constant dense<0.000000e+00> : vector<128x8xf32>
    %62 = tpu.matmul %59, %61, %cst_66 {dimension_numbers = #tpu.dot_dimension_numbers<[1], [0], [0], [1], [0, 0, 1, 1], [], []>} : vector<128x4xf32>, vector<4x8xf32>, vector<128x8xf32> -> vector<128x8xf32>
    %63 = arith.addf %57, %62 : vector<128x8xf32>
    %c2_67 = arith.constant 2 : index
    %c8_68 = arith.constant 8 : index
    %c0_69 = arith.constant 0 : index
    %64 = vector.load %arg8[%c2_67, %c8_68, %c0_69] : memref<10x32x4xf32, #tpu.memory_space<vmem>>, vector<8x16x4xf32>
    %65 = vector.shape_cast %64 : vector<8x16x4xf32> to vector<128x4xf32>
    %c7_70 = arith.constant 7 : index
    %c0_71 = arith.constant 0 : index
    %c0_72 = arith.constant 0 : index
    %66 = vector.load %arg5[%c7_70, %c0_71, %c0_72] : memref<9x4x8xf32, #tpu.memory_space<vmem>>, vector<1x4x8xf32>
    %67 = vector.shape_cast %66 : vector<1x4x8xf32> to vector<4x8xf32>
    %cst_73 = arith.constant dense<0.000000e+00> : vector<128x8xf32>
    %68 = tpu.matmul %65, %67, %cst_73 {dimension_numbers = #tpu.dot_dimension_numbers<[1], [0], [0], [1], [0, 0, 1, 1], [], []>} : vector<128x4xf32>, vector<4x8xf32>, vector<128x8xf32> -> vector<128x8xf32>
    %69 = arith.addf %63, %68 : vector<128x8xf32>
    %c2_74 = arith.constant 2 : index
    %c9_75 = arith.constant 9 : index
    %c0_76 = arith.constant 0 : index
    %70 = vector.load %arg8[%c2_74, %c9_75, %c0_76] : memref<10x32x4xf32, #tpu.memory_space<vmem>>, vector<8x16x4xf32>
    %71 = vector.shape_cast %70 : vector<8x16x4xf32> to vector<128x4xf32>
    %c8_77 = arith.constant 8 : index
    %c0_78 = arith.constant 0 : index
    %c0_79 = arith.constant 0 : index
    %72 = vector.load %arg5[%c8_77, %c0_78, %c0_79] : memref<9x4x8xf32, #tpu.memory_space<vmem>>, vector<1x4x8xf32>
    %73 = vector.shape_cast %72 : vector<1x4x8xf32> to vector<4x8xf32>
    %cst_80 = arith.constant dense<0.000000e+00> : vector<128x8xf32>
    %74 = tpu.matmul %71, %73, %cst_80 {dimension_numbers = #tpu.dot_dimension_numbers<[1], [0], [0], [1], [0, 0, 1, 1], [], []>} : vector<128x4xf32>, vector<4x8xf32>, vector<128x8xf32> -> vector<128x8xf32>
    %75 = arith.addf %69, %74 : vector<128x8xf32>
    %c0_81 = arith.constant 0 : index
    %c0_82 = arith.constant 0 : index
    %76 = vector.load %arg6[%c0_81, %c0_82] : memref<1x8xf32, #tpu.memory_space<vmem>>, vector<1x8xf32>
    %77 = vector.shape_cast %76 : vector<1x8xf32> to vector<8xf32>
    %78 = vector.shape_cast %77 : vector<8xf32> to vector<1x8xf32>
    %79 = vector.broadcast %78 : vector<1x8xf32> to vector<128x8xf32>
    %80 = arith.addf %75, %79 : vector<128x8xf32>
    %81 = arith.negf %80 : vector<128x8xf32>
    %82 = math.exp %81 : vector<128x8xf32>
    %cst_83 = arith.constant 1.000000e+00 : f32
    %83 = vector.broadcast %cst_83 : f32 to vector<128x8xf32>
    %84 = arith.addf %83, %82 : vector<128x8xf32>
    %85 = arith.divf %83, %84 : vector<128x8xf32>
    %86 = arith.mulf %80, %85 : vector<128x8xf32>
    %87 = vector.shape_cast %86 : vector<128x8xf32> to vector<8x16x8xf32>
    %c0_84 = arith.constant 0 : index
    %c0_85 = arith.constant 0 : index
    %c0_86 = arith.constant 0 : index
    %c0_87 = arith.constant 0 : index
    %88 = vector.load %arg7[%c0_84, %c0_85, %c0_86, %c0_87] : memref<1x8x16x8xf32, #tpu.memory_space<vmem>>, vector<1x8x16x8xf32>
    %89 = vector.shape_cast %88 : vector<1x8x16x8xf32> to vector<8x16x8xf32>
    %90 = vector.shape_cast %87 : vector<8x16x8xf32> to vector<1x8x16x8xf32>
    tpu.vector_store %arg7[%c0_84, %c0_85, %c0_86, %c0_87], %90 {strides = array<i32>} : memref<1x8x16x8xf32, #tpu.memory_space<vmem>>, vector<1x8x16x8xf32>,
    return
  }
  func.func @transform_0(%arg0: i32, %arg1: i32) -> (i32, i32, i32, i32) {
    %c8_i32 = arith.constant 8 : i32
    %0 = arith.muli %arg1, %c8_i32 : i32
    %c1_i32 = arith.constant 1 : i32
    %1 = arith.subi %0, %c1_i32 : i32
    %c0_i32 = arith.constant 0 : i32
    %2 = arith.maxsi %1, %c0_i32 : i32
    %c0_i32_0 = arith.constant 0 : i32
    %c0_i32_1 = arith.constant 0 : i32
    %c0_i32_2 = arith.constant 0 : i32
    return %arg0, %2, %c0_i32_0, %c0_i32_1 : i32, i32, i32, i32
  }
  func.func @transform_1(%arg0: i32, %arg1: i32) -> (i32, i32, i32, i32) {
    %c0_i32 = arith.constant 0 : i32
    %c0_i32_0 = arith.constant 0 : i32
    %c0_i32_1 = arith.constant 0 : i32
    return %arg0, %arg1, %c0_i32, %c0_i32_0 : i32, i32, i32, i32
  }
  func.func @transform_2(%arg0: i32, %arg1: i32) -> (i32, i32, i32, i32) {
    %c1_i32 = arith.constant 1 : i32
    %0 = arith.addi %arg1, %c1_i32 : i32
    %c8_i32 = arith.constant 8 : i32
    %1 = arith.muli %0, %c8_i32 : i32
    %c15_i32 = arith.constant 15 : i32
    %2 = arith.minsi %1, %c15_i32 : i32
    %c0_i32 = arith.constant 0 : i32
    %c0_i32_0 = arith.constant 0 : i32
    %c0_i32_1 = arith.constant 0 : i32
    return %arg0, %2, %c0_i32, %c0_i32_0 : i32, i32, i32, i32
  }
  func.func @transform_3(%arg0: i32, %arg1: i32) -> (i32, i32, i32) {
    %c0_i32 = arith.constant 0 : i32
    %c0_i32_0 = arith.constant 0 : i32
    %c0_i32_1 = arith.constant 0 : i32
    %c0_i32_2 = arith.constant 0 : i32
    return %c0_i32, %c0_i32_0, %c0_i32_1 : i32, i32, i32
  }
  func.func @transform_4(%arg0: i32, %arg1: i32) -> (i32, i32) {
    %c0_i32 = arith.constant 0 : i32
    %c0_i32_0 = arith.constant 0 : i32
    %c0_i32_1 = arith.constant 0 : i32
    return %c0_i32, %c0_i32_0 : i32, i32
  }
  func.func @transform_5(%arg0: i32, %arg1: i32) -> (i32, i32, i32, i32) {
    %c0_i32 = arith.constant 0 : i32
    %c0_i32_0 = arith.constant 0 : i32
    %c0_i32_1 = arith.constant 0 : i32
    return %arg0, %arg1, %c0_i32, %c0_i32_0 : i32, i32, i32, i32
  }
}

</mosaic_0001>

<llo_original>
// kernel: tpu_custom_call.1
$region0: #{tpu_custom_call.1}
  #allocation0 [shape = 'u32[]', space=smem, size = 0x4, offset = 0x4, fixed_abs, tag = 'smem constant byte address 0x4 - core index']
  #allocation1 [shape = 'u32[144,128]{1,0:T(1,128)}', space=vmem, size = 0x12000, scoped, tag = 'internal scratch']
  #allocation2 [shape = 'f32[10,32,4]{2,1,0:T(8,128)}', space=vmem, size = 0x28000, scoped, tag = 'scratch operand']
  %s0 = inlined_call_operand.vmem [shape: f32[2,16,16,4], index: 0, kind: input, shape index: {}]
  %s1 = inlined_call_operand.vmem [shape: f32[2,16,16,4], index: 1, kind: input, shape index: {}]
  %s2 = inlined_call_operand.vmem [shape: f32[2,16,16,4], index: 2, kind: input, shape index: {}]
  %s3 = inlined_call_operand.vmem [shape: f32[9,4,8], index: 3, kind: input, shape index: {}]
  %s4 = inlined_call_operand.vmem [shape: f32[1,8], index: 4, kind: input, shape index: {}]
  %s5 = inlined_call_operand.vmem [shape: f32[2,16,16,8], index: 5, kind: output, shape index: {}]
  %s6 = sld [smem:[#allocation0]]
  $region53: #{tpu_custom_call.1} parent=0
    _
  %s8 = ssub.s32 1, %s6
  %s9 = scalar_select 0, %s8, %s6
  loop: start=0, step=1, limit=6
  $region2: #{tpu_custom_call.1} parent=0 // loop_pre_header
    _
  $region3: #{tpu_custom_call.1} parent=0 // loop_header
    %s11 = sphi 0, %s15
    %p12 = scmp.ge.s32.totalorder %s11, 6
    %s18 = sphi 0, %s30
    %s19 = sphi 0, %s26
    %s20 = sphi 0, %s18
    %s21 = sphi 0, %s19
    %s22 = sphi 0, %s20
    %s23 = sphi 0, %s21
    %s43 = sphi 0, %s45
    %s46 = sphi 0, %s43
    %s47 = sphi 0, %s46
    %s63 = sphi 0, %s47
    %s71 = sphi 0, %s73
    %s74 = sphi 0, %s71
    %s75 = sphi 0, %s74
    %s91 = sphi 0, %s75
    %s107 = sphi 0, %s109
    %s110 = sphi 0, %s107
    %s111 = sphi 0, %s110
    %s127 = sphi 0, %s111
    %s131 = sphi 0, %s131
    %s133 = sphi 0, %s131
    %s134 = sphi 0, %s133
    %s148 = sphi 0, %s134
    %s152 = sphi 0, %s152
    %s154 = sphi 0, %s152
    %s155 = sphi 0, %s154
    %s169 = sphi 0, %s155
    %s177 = sphi 0, %s179
    %s180 = sphi 0, %s177
    %s181 = sphi 0, %s180
    %s197 = sphi 0, %s181
  $region4: #{tpu_custom_call.1} parent=0 // loop_header_branch
    %14 = sbr.rel (%p12) target = $region8
  $region5: #{tpu_custom_call.1} parent=0 // loop_body
    %s16 = ssub.s32 %s11, 1
    %s17 = ssub.s32 %s11, 2
    %s24 = sadd.s32 1, %s19
    %p25 = scmp.ge.s32.totalorder %s24, 2
    %s26 = scalar_select %p25, 0, %s24
    %s27 = sadd.s32 1, %s18
    %s28 = scalar_select %p25, %s27, %s18
    %p29 = scmp.ge.s32.totalorder %s28, 2
    %s30 = scalar_select %p29, 0, %s28
    %s31 = smul.u32 %s19, 8
    %s32 = ssub.s32 %s31, 1
    %p33 = scmp.gt.s32.totalorder %s32, 0
    %s34 = scalar_select %p33, %s32, 0
    %s35 = smul.u32 %s26, 8
    %s36 = ssub.s32 %s35, 1
    %p37 = scmp.gt.s32.totalorder %s36, 0
    %s38 = scalar_select %p37, %s36, 0
    %s39 = ssub.s32 %s18, %s30
    %s40 = ssub.s32 %s34, %s38
    %s41 = sor.u32 %s39, %s40
    %p42 = scmp.eq.s32.totalorder %s41, 0
    %s44 = sadd.s32 %s43, 1
    %s45 = scalar_select %p42, %s43, %s44
    %p48 = pneg %p42
    %p49 = scmp.eq.s32.totalorder %s11, 3
    %p50 = por %p48, %p49
    %p51 = scmp.ne.s32.totalorder %s43, %s46
    %p52 = scmp.eq.s32.totalorder %s11, 0
    %p53 = por %p51, %p52
    %p54 = scmp.ne.s32.totalorder %s43, %s46
    %p55 = scmp.eq.s32.totalorder %s16, 3
    %p56 = por %p54, %p55
    %p57 = scmp.ne.s32.totalorder %s46, %s47
    %p58 = scmp.eq.s32.totalorder %s16, 0
    %p59 = por %p57, %p58
    %p60 = scmp.ne.s32.totalorder %s46, %s47
    %p61 = scmp.eq.s32.totalorder %s17, 3
    %p62 = por %p60, %p61
    %p64 = scmp.ne.s32.totalorder %s47, %s63
    %p65 = scmp.eq.s32.totalorder %s17, 0
    %p66 = por %p64, %p65
    %s67 = ssub.s32 %s18, %s30
    %s68 = ssub.s32 %s19, %s26
    %s69 = sor.u32 %s67, %s68
    %p70 = scmp.eq.s32.totalorder %s69, 0
    %s72 = sadd.s32 %s71, 1
    %s73 = scalar_select %p70, %s71, %s72
    %p76 = pneg %p70
    %p77 = scmp.eq.s32.totalorder %s11, 3
    %p78 = por %p76, %p77
    %p79 = scmp.ne.s32.totalorder %s71, %s74
    %p80 = scmp.eq.s32.totalorder %s11, 0
    %p81 = por %p79, %p80
    %p82 = scmp.ne.s32.totalorder %s71, %s74
    %p83 = scmp.eq.s32.totalorder %s16, 3
    %p84 = por %p82, %p83
    %p85 = scmp.ne.s32.totalorder %s74, %s75
    %p86 = scmp.eq.s32.totalorder %s16, 0
    %p87 = por %p85, %p86
    %p88 = scmp.ne.s32.totalorder %s74, %s75
    %p89 = scmp.eq.s32.totalorder %s17, 3
    %p90 = por %p88, %p89
    %p92 = scmp.ne.s32.totalorder %s75, %s91
    %p93 = scmp.eq.s32.totalorder %s17, 0
    %p94 = por %p92, %p93
    %s95 = sadd.s32 %s19, 1
    %s96 = smul.u32 %s95, 8
    %p97 = scmp.lt.s32.totalorder %s96, 15
    %s98 = scalar_select %p97, %s96, 15
    %s99 = sadd.s32 %s26, 1
    %s100 = smul.u32 %s99, 8
    %p101 = scmp.lt.s32.totalorder %s100, 15
    %s102 = scalar_select %p101, %s100, 15
    %s103 = ssub.s32 %s18, %s30
    %s104 = ssub.s32 %s98, %s102
    %s105 = sor.u32 %s103, %s104
    %p106 = scmp.eq.s32.totalorder %s105, 0
    %s108 = sadd.s32 %s107, 1
    %s109 = scalar_select %p106, %s107, %s108
    %p112 = pneg %p106
    %p113 = scmp.eq.s32.totalorder %s11, 3
    %p114 = por %p112, %p113
    %p115 = scmp.ne.s32.totalorder %s107, %s110
    %p116 = scmp.eq.s32.totalorder %s11, 0
    %p117 = por %p115, %p116
    %p118 = scmp.ne.s32.totalorder %s107, %s110
    %p119 = scmp.eq.s32.totalorder %s16, 3
    %p120 = por %p118, %p119
    %p121 = scmp.ne.s32.totalorder %s110, %s111
    %p122 = scmp.eq.s32.totalorder %s16, 0
    %p123 = por %p121, %p122
    %p124 = scmp.ne.s32.totalorder %s110, %s111
    %p125 = scmp.eq.s32.totalorder %s17, 3
    %p126 = por %p124, %p125
    %p128 = scmp.ne.s32.totalorder %s111, %s127
    %p129 = scmp.eq.s32.totalorder %s17, 0
    %p130 = por %p128, %p129
    %s132 = sadd.s32 %s131, 1
    %p135 = scmp.eq.s32.totalorder %s11, 3
    %p136 = scmp.ne.s32.totalorder %s131, %s133
    %p137 = scmp.eq.s32.totalorder %s11, 0
    %p138 = por %p136, %p137
    %p139 = scmp.ne.s32.totalorder %s131, %s133
    %p140 = scmp.eq.s32.totalorder %s16, 3
    %p141 = por %p139, %p140
    %p142 = scmp.ne.s32.totalorder %s133, %s134
    %p143 = scmp.eq.s32.totalorder %s16, 0
    %p144 = por %p142, %p143
    %p145 = scmp.ne.s32.totalorder %s133, %s134
    %p146 = scmp.eq.s32.totalorder %s17, 3
    %p147 = por %p145, %p146
    %p149 = scmp.ne.s32.totalorder %s134, %s148
    %p150 = scmp.eq.s32.totalorder %s17, 0
    %p151 = por %p149, %p150
    %s153 = sadd.s32 %s152, 1
    %p156 = scmp.eq.s32.totalorder %s11, 3
    %p157 = scmp.ne.s32.totalorder %s152, %s154
    %p158 = scmp.eq.s32.totalorder %s11, 0
    %p159 = por %p157, %p158
    %p160 = scmp.ne.s32.totalorder %s152, %s154
    %p161 = scmp.eq.s32.totalorder %s16, 3
    %p162 = por %p160, %p161
    %p163 = scmp.ne.s32.totalorder %s154, %s155
    %p164 = scmp.eq.s32.totalorder %s16, 0
    %p165 = por %p163, %p164
    %p166 = scmp.ne.s32.totalorder %s154, %s155
    %p167 = scmp.eq.s32.totalorder %s17, 3
    %p168 = por %p166, %p167
    %p170 = scmp.ne.s32.totalorder %s155, %s169
    %p171 = scmp.eq.s32.totalorder %s17, 0
    %p172 = por %p170, %p171
    %s173 = ssub.s32 %s18, %s30
    %s174 = ssub.s32 %s19, %s26
    %s175 = sor.u32 %s173, %s174
    %p176 = scmp.eq.s32.totalorder %s175, 0
    %s178 = sadd.s32 %s177, 1
    %s179 = scalar_select %p176, %s177, %s178
    %p182 = pneg %p176
    %p183 = scmp.eq.s32.totalorder %s11, 3
    %p184 = por %p182, %p183
    %p185 = scmp.ne.s32.totalorder %s177, %s180
    %p186 = scmp.eq.s32.totalorder %s11, 0
    %p187 = por %p185, %p186
    %p188 = scmp.ne.s32.totalorder %s177, %s180
    %p189 = scmp.eq.s32.totalorder %s16, 3
    %p190 = por %p188, %p189
    %p191 = scmp.ne.s32.totalorder %s180, %s181
    %p192 = scmp.eq.s32.totalorder %s16, 0
    %p193 = por %p191, %p192
    %p194 = scmp.ne.s32.totalorder %s180, %s181
    %p195 = scmp.eq.s32.totalorder %s17, 3
    %p196 = por %p194, %p195
    %p198 = scmp.ne.s32.totalorder %s181, %s197
    %p199 = scmp.eq.s32.totalorder %s17, 0
    %p200 = por %p198, %p199
    %p201 = scmp.le.s32.totalorder 1, %s11
    %p202 = scmp.lt.s32.totalorder %s11, 5
    %p203 = pnand %p201, %p202
    %p204 = pneg %p203
    // Predicated region
    $region9: #{tpu_custom_call.1} parent=5 // pred_check
      _
    $region10: #{tpu_custom_call.1} parent=5 // pred_check_branch
      %206 = sbr.rel (%p203) target = $region12
    $region11: #{tpu_custom_call.1} parent=5 // pred_region
      %s207 = ssub.s32 %s11, 1
      // Predicated region
      $region13: #{tpu_custom_call.1} parent=11 // pred_check
        %p208 = pneg %p144
      $region14: #{tpu_custom_call.1} parent=11 // pred_check_branch
        %210 = sbr.rel (%p208) target = $region16
      $region15: #{tpu_custom_call.1} parent=11 // pred_region
        _
      $region16: #{tpu_custom_call.1} parent=11 // pred_fallthru
        _
      // Predicated region
      $region17: #{tpu_custom_call.1} parent=11 // pred_check
        %p211 = pneg %p165
      $region18: #{tpu_custom_call.1} parent=11 // pred_check_branch
        %213 = sbr.rel (%p211) target = $region20
      $region19: #{tpu_custom_call.1} parent=11 // pred_region
        _
      $region20: #{tpu_custom_call.1} parent=11 // pred_fallthru
        _
    $region12: #{tpu_custom_call.1} parent=5 // pred_fallthru
      _
    %p214 = scmp.lt.s32.totalorder %s11, 4
    // Predicated region
    $region21: #{tpu_custom_call.1} parent=5 // pred_check
      %p215 = pneg %p214
    $region22: #{tpu_custom_call.1} parent=5 // pred_check_branch
      %217 = sbr.rel (%p215) target = $region24
    $region23: #{tpu_custom_call.1} parent=5 // pred_region
      // Predicated region
      $region25: #{tpu_custom_call.1} parent=23 // pred_check
        %p218 = pneg %p53
      $region26: #{tpu_custom_call.1} parent=23 // pred_check_branch
        %220 = sbr.rel (%p218) target = $region28
      $region27: #{tpu_custom_call.1} parent=23 // pred_region
        %s221 = smul.u32 %s19, 8
        %s222 = ssub.s32 %s221, 1
        %p223 = scmp.gt.s32.totalorder %s222, 0
        %s224 = scalar_select %p223, %s222, 0
        %p225 = scmp.lt.s32.totalorder %s18, 1
        %s226 = scalar_select %p225, %s18, 1
        %p227 = scmp.lt.s32.totalorder %s224, 15
        %s228 = scalar_select %p227, %s224, 15
        %s229 = smul.addr %s228, 2
        %s230 = smul.addr %s226, 32
        %s231 = sadd.s32 %s229, %s230
        %s232 = smul.addr %s231, 8
        %s233 = scalar_lea.vmem %s0, %s232
        %s234 = smul.u32 %s19, 8
        %s235 = ssub.s32 %s234, 1
        %p236 = scmp.gt.s32.totalorder %s235, 0
        %s237 = scalar_select %p236, %s235, 0
      $region28: #{tpu_custom_call.1} parent=23 // pred_fallthru
        _
      // Predicated region
      $region29: #{tpu_custom_call.1} parent=23 // pred_check
        %p238 = pneg %p81
      $region30: #{tpu_custom_call.1} parent=23 // pred_check_branch
        %240 = sbr.rel (%p238) target = $region32
      $region31: #{tpu_custom_call.1} parent=23 // pred_region
        %s241 = smul.u32 8, %s19
        %p242 = scmp.lt.s32.totalorder %s18, 1
        %s243 = scalar_select %p242, %s18, 1
        %p244 = scmp.lt.s32.totalorder %s241, 15
        %s245 = scalar_select %p244, %s241, 15
        %s246 = smul.addr %s245, 2
        %s247 = smul.addr %s243, 32
        %s248 = sadd.s32 %s246, %s247
        %s249 = smul.addr %s248, 8
        %s250 = scalar_lea.vmem %s1, %s249
        %s251 = smul.u32 8, %s19
      $region32: #{tpu_custom_call.1} parent=23 // pred_fallthru
        _
      // Predicated region
      $region33: #{tpu_custom_call.1} parent=23 // pred_check
        %p252 = pneg %p117
      $region34: #{tpu_custom_call.1} parent=23 // pred_check_branch
        %254 = sbr.rel (%p252) target = $region36
      $region35: #{tpu_custom_call.1} parent=23 // pred_region
        %s255 = sadd.s32 %s19, 1
        %s256 = smul.u32 %s255, 8
        %p257 = scmp.lt.s32.totalorder %s256, 15
        %s258 = scalar_select %p257, %s256, 15
        %p259 = scmp.lt.s32.totalorder %s18, 1
        %s260 = scalar_select %p259, %s18, 1
        %p261 = scmp.lt.s32.totalorder %s258, 15
        %s262 = scalar_select %p261, %s258, 15
        %s263 = smul.addr %s262, 2
        %s264 = smul.addr %s260, 32
        %s265 = sadd.s32 %s263, %s264
        %s266 = smul.addr %s265, 8
        %s267 = scalar_lea.vmem %s2, %s266
        %s268 = sadd.s32 %s19, 1
        %s269 = smul.u32 %s268, 8
        %p270 = scmp.lt.s32.totalorder %s269, 15
        %s271 = scalar_select %p270, %s269, 15
      $region36: #{tpu_custom_call.1} parent=23 // pred_fallthru
        _
    $region24: #{tpu_custom_call.1} parent=5 // pred_fallthru
      _
    %p272 = scmp.le.s32.totalorder 1, %s11
    %p273 = scmp.lt.s32.totalorder %s11, 5
    %p274 = pnand %p272, %p273
    %p275 = pneg %p274
    // Predicated region
    $region37: #{tpu_custom_call.1} parent=5 // pred_check
      _
    $region38: #{tpu_custom_call.1} parent=5 // pred_check_branch
      %277 = sbr.rel (%p274) target = $region40
    $region39: #{tpu_custom_call.1} parent=5 // pred_region
      %s278 = ssub.s32 %s11, 1
      %s279 = smul.u32 %s21, 8
      %s280 = ssub.s32 %s279, 1
      %p281 = scmp.gt.s32.totalorder %s280, 0
      %s282 = scalar_select %p281, %s280, 0
      %p283 = scmp.lt.s32.totalorder %s20, 1
      %s284 = scalar_select %p283, %s20, 1
      %p285 = scmp.lt.s32.totalorder %s282, 15
      %s286 = scalar_select %p285, %s282, 15
      %s287 = smul.addr %s286, 2
      %s288 = smul.addr %s284, 32
      %s289 = sadd.s32 %s287, %s288
      %s290 = smul.addr %s289, 8
      %s291 = scalar_lea.vmem %s0, %s290
      %p292 = pneg %p59
      %p293 = pneg %p56
      %s294 = smul.u32 8, %s21
      %p295 = scmp.lt.s32.totalorder %s20, 1
      %s296 = scalar_select %p295, %s20, 1
      %p297 = scmp.lt.s32.totalorder %s294, 15
      %s298 = scalar_select %p297, %s294, 15
      %s299 = smul.addr %s298, 2
      %s300 = smul.addr %s296, 32
      %s301 = sadd.s32 %s299, %s300
      %s302 = smul.addr %s301, 8
      %s303 = scalar_lea.vmem %s1, %s302
      %p304 = pneg %p87
      %p305 = pneg %p84
      %s306 = sadd.s32 %s21, 1
      %s307 = smul.u32 %s306, 8
      %p308 = scmp.lt.s32.totalorder %s307, 15
      %s309 = scalar_select %p308, %s307, 15
      %p310 = scmp.lt.s32.totalorder %s20, 1
      %s311 = scalar_select %p310, %s20, 1
      %p312 = scmp.lt.s32.totalorder %s309, 15
      %s313 = scalar_select %p312, %s309, 15
      %s314 = smul.addr %s313, 2
      %s315 = smul.addr %s311, 32
      %s316 = sadd.s32 %s314, %s315
      %s317 = smul.addr %s316, 8
      %s318 = scalar_lea.vmem %s2, %s317
      %p319 = pneg %p123
      %p320 = pneg %p120
      %p321 = pneg %p144
      %p322 = pneg %p141
      %p323 = pneg %p165
      %p324 = pneg %p162
      %p325 = pneg %p193
      %p326 = pneg %p190
      %s327 = smul.u32 8, %s21
      %p328 = scmp.lt.s32.totalorder %s20, 1
      %s329 = scalar_select %p328, %s20, 1
      %p330 = scmp.lt.s32.totalorder %s327, 15
      %s331 = scalar_select %p330, %s327, 15
      %s332 = smul.addr %s331, 2
      %s333 = smul.addr %s329, 32
      %s334 = sadd.s32 %s332, %s333
      %s335 = smul.addr %s334, 8
      %s336 = scalar_lea.vmem %s5, %s335
      %s337 = smul.u32 %s21, 8
      %s338 = ssub.s32 %s337, 1
      %p339 = scmp.gt.s32.totalorder %s338, 0
      %s340 = scalar_select %p339, %s338, 0
      %p341 = scmp.lt.s32.totalorder %s20, 1
      %s342 = scalar_select %p341, %s20, 1
      %p343 = scmp.lt.s32.totalorder %s340, 15
      %s344 = scalar_select %p343, %s340, 15
      %s345 = smul.addr %s344, 2
      %s346 = smul.addr %s342, 32
      %s347 = sadd.s32 %s345, %s346
      %s348 = smul.addr %s347, 8
      %s349 = scalar_lea.vmem %s0, %s348
      %s350 = smul.u32 %s21, 8
      %s351 = ssub.s32 %s350, 1
      %p352 = scmp.gt.s32.totalorder %s351, 0
      %s353 = scalar_select %p352, %s351, 0
      %s354 = smul.u32 8, %s21
      %p355 = scmp.lt.s32.totalorder %s20, 1
      %s356 = scalar_select %p355, %s20, 1
      %p357 = scmp.lt.s32.totalorder %s354, 15
      %s358 = scalar_select %p357, %s354, 15
      %s359 = smul.addr %s358, 2
      %s360 = smul.addr %s356, 32
      %s361 = sadd.s32 %s359, %s360
      %s362 = smul.addr %s361, 8
      %s363 = scalar_lea.vmem %s1, %s362
      %s364 = smul.u32 8, %s21
      %s365 = sadd.s32 %s21, 1
      %s366 = smul.u32 %s365, 8
      %p367 = scmp.lt.s32.totalorder %s366, 15
      %s368 = scalar_select %p367, %s366, 15
      %p369 = scmp.lt.s32.totalorder %s20, 1
      %s370 = scalar_select %p369, %s20, 1
      %p371 = scmp.lt.s32.totalorder %s368, 15
      %s372 = scalar_select %p371, %s368, 15
      %s373 = smul.addr %s372, 2
      %s374 = smul.addr %s370, 32
      %s375 = sadd.s32 %s373, %s374
      %s376 = smul.addr %s375, 8
      %s377 = scalar_lea.vmem %s2, %s376
      %s378 = sadd.s32 %s21, 1
      %s379 = smul.u32 %s378, 8
      %p380 = scmp.lt.s32.totalorder %s379, 15
      %s381 = scalar_select %p380, %s379, 15
      %s382 = smul.u32 8, %s21
      %p383 = scmp.lt.s32.totalorder %s20, 1
      %s384 = scalar_select %p383, %s20, 1
      %p385 = scmp.lt.s32.totalorder %s382, 15
      %s386 = scalar_select %p385, %s382, 15
      %s387 = smul.addr %s386, 2
      %s388 = smul.addr %s384, 32
      %s389 = sadd.s32 %s387, %s388
      %s390 = smul.addr %s389, 8
      %s391 = scalar_lea.vmem %s5, %s390
      %s392 = smul.u32 8, %s21
      %v393 = vld [vmem:[%s349] sm:$0xff]
      %v394 = vld [vmem:[%s349 + $0x8] sm:$0xff]
      %v395 = vld [vmem:[%s377] sm:$0xff]
      %v396 = vld [vmem:[%s377 + $0x8] sm:$0xff]
      %p397 = scmp.gt.s32.totalorder %s21, 0
      %s398 = scalar_select %p397, 1, 0
      %v399 = vstv %s398
      %vm400 = vcmp.eq.s32.totalorder %v399, 1
      %v401 = vsel %vm400, %v393, 0.0
      %v402 = vsel %vm400, %v394, 0.0
      %p403 = scmp.lt.s32.totalorder %s21, 1
      %s404 = scalar_select %p403, 1, 0
      %v405 = vstv %s404
      %vm406 = vcmp.eq.s32.totalorder %v405, 1
      %v407 = vsel %vm406, %v395, 0.0
      %v408 = vsel %vm406, %v396, 0.0
      %vm409 = vcmask 31744
      %410 = vst.msk [vmem:[#allocation2] sm:$0xff] %vm409, 0.0
      %411 = vst.msk [vmem:[#allocation2 + $0x20] sm:$0xff] %vm409, 0.0
      %412 = vst.msk [vmem:[#allocation2 + $0x40] sm:$0xff] %vm409, 0.0
      %413 = vst.msk [vmem:[#allocation2 + $0x60] sm:$0xff] %vm409, 0.0
      %414 = vst.msk [vmem:[#allocation2 + $0x80] sm:$0xff] %vm409, 0.0
      %415 = vst.msk [vmem:[#allocation2 + $0xa0] sm:$0xff] %vm409, 0.0
      %416 = vst.msk [vmem:[#allocation2 + $0xc0] sm:$0xff] %vm409, 0.0
      %417 = vst.msk [vmem:[#allocation2 + $0xe0] sm:$0xff] %vm409, 0.0
      %418 = vst.msk [vmem:[#allocation2 + $0x100] sm:$0xff] %vm409, 0.0
      %419 = vst.msk [vmem:[#allocation2 + $0x120] sm:$0xff] %vm409, 0.0
      %420 = vst.msk [vmem:[#allocation2 + $0x18] sm:$0xff] %vm409, 0.0
      %421 = vst.msk [vmem:[#allocation2 + $0x38] sm:$0xff] %vm409, 0.0
      %422 = vst.msk [vmem:[#allocation2 + $0x58] sm:$0xff] %vm409, 0.0
      %423 = vst.msk [vmem:[#allocation2 + $0x78] sm:$0xff] %vm409, 0.0
      %424 = vst.msk [vmem:[#allocation2 + $0x98] sm:$0xff] %vm409, 0.0
      %425 = vst.msk [vmem:[#allocation2 + $0xb8] sm:$0xff] %vm409, 0.0
      %426 = vst.msk [vmem:[#allocation2 + $0xd8] sm:$0xff] %vm409, 0.0
      %427 = vst.msk [vmem:[#allocation2 + $0xf8] sm:$0xff] %vm409, 0.0
      %428 = vst.msk [vmem:[#allocation2 + $0x118] sm:$0xff] %vm409, 0.0
      %429 = vst.msk [vmem:[#allocation2 + $0x138] sm:$0xff] %vm409, 0.0
      %430 = vst.msk [vmem:[#allocation2 + $0x8] sm:$0xff] %vm409, %v401
      %431 = vst.msk [vmem:[#allocation2 + $0x10] sm:$0xff] %vm409, %v402
      %v432 = vld [vmem:[%s363] sm:$0xff]
      %v433 = vld [vmem:[%s363 + $0x8] sm:$0xff]
      %v434 = vld [vmem:[%s363 + $0x10] sm:$0xff]
      %v435 = vld [vmem:[%s363 + $0x18] sm:$0xff]
      %v436 = vld [vmem:[%s363 + $0x20] sm:$0xff]
      %v437 = vld [vmem:[%s363 + $0x28] sm:$0xff]
      %v438 = vld [vmem:[%s363 + $0x30] sm:$0xff]
      %v439 = vld [vmem:[%s363 + $0x38] sm:$0xff]
      %v440 = vld [vmem:[%s363 + $0x40] sm:$0xff]
      %v441 = vld [vmem:[%s363 + $0x48] sm:$0xff]
      %v442 = vld [vmem:[%s363 + $0x50] sm:$0xff]
      %v443 = vld [vmem:[%s363 + $0x58] sm:$0xff]
      %v444 = vld [vmem:[%s363 + $0x60] sm:$0xff]
      %v445 = vld [vmem:[%s363 + $0x68] sm:$0xff]
      %v446 = vld [vmem:[%s363 + $0x70] sm:$0xff]
      %v447 = vld [vmem:[%s363 + $0x78] sm:$0xff]
      %s448 = scalar_lea.vmem [#allocation2], 32
      %449 = vst.msk [vmem:[%s448 + $0x8] sm:$0xff] %vm409, %v432
      %450 = vst.msk [vmem:[%s448 + $0x10] sm:$0xff] %vm409, %v433
      %451 = vst.msk [vmem:[%s448 + $0x28] sm:$0xff] %vm409, %v434
      %452 = vst.msk [vmem:[%s448 + $0x30] sm:$0xff] %vm409, %v435
      %453 = vst.msk [vmem:[%s448 + $0x48] sm:$0xff] %vm409, %v436
      %454 = vst.msk [vmem:[%s448 + $0x50] sm:$0xff] %vm409, %v437
      %455 = vst.msk [vmem:[%s448 + $0x68] sm:$0xff] %vm409, %v438
      %456 = vst.msk [vmem:[%s448 + $0x70] sm:$0xff] %vm409, %v439
      %457 = vst.msk [vmem:[%s448 + $0x88] sm:$0xff] %vm409, %v440
      %458 = vst.msk [vmem:[%s448 + $0x90] sm:$0xff] %vm409, %v441
      %459 = vst.msk [vmem:[%s448 + $0xa8] sm:$0xff] %vm409, %v442
      %460 = vst.msk [vmem:[%s448 + $0xb0] sm:$0xff] %vm409, %v443
      %461 = vst.msk [vmem:[%s448 + $0xc8] sm:$0xff] %vm409, %v444
      %462 = vst.msk [vmem:[%s448 + $0xd0] sm:$0xff] %vm409, %v445
      %463 = vst.msk [vmem:[%s448 + $0xe8] sm:$0xff] %vm409, %v446
      %464 = vst.msk [vmem:[%s448 + $0xf0] sm:$0xff] %vm409, %v447
      %s465 = scalar_lea.vmem [#allocation2], 288
      %466 = vst.msk [vmem:[%s465 + $0x8] sm:$0xff] %vm409, %v407
      %467 = vst.msk [vmem:[%s465 + $0x10] sm:$0xff] %vm409, %v408
      %v468 = vld [vmem:[#allocation2 + $0x7] sm:$0xff]
      %v469 = vld [vmem:[#allocation2 + $0xf] sm:$0xff]
      %v470 = vld [vmem:[#allocation2 + $0x27] sm:$0xff]
      %v471 = vld [vmem:[#allocation2 + $0x2f] sm:$0xff]
      %v472 = vld [vmem:[#allocation2 + $0x47] sm:$0xff]
      %v473 = vld [vmem:[#allocation2 + $0x4f] sm:$0xff]
      %v474 = vld [vmem:[#allocation2 + $0x67] sm:$0xff]
      %v475 = vld [vmem:[#allocation2 + $0x6f] sm:$0xff]
      %v476 = vld [vmem:[#allocation2 + $0x87] sm:$0xff]
      %v477 = vld [vmem:[#allocation2 + $0x8f] sm:$0xff]
      %v478 = vld [vmem:[#allocation2 + $0xa7] sm:$0xff]
      %v479 = vld [vmem:[#allocation2 + $0xaf] sm:$0xff]
      %v480 = vld [vmem:[#allocation2 + $0xc7] sm:$0xff]
      %v481 = vld [vmem:[#allocation2 + $0xcf] sm:$0xff]
      %v482 = vld [vmem:[#allocation2 + $0xe7] sm:$0xff]
      %v483 = vld [vmem:[#allocation2 + $0xef] sm:$0xff]
      %v484 = vld [vmem:[%s3] sm:$0xf]
      %v485 = vld [vmem:[#allocation2 + $0x8] sm:$0xff]
      %v486 = vld [vmem:[#allocation2 + $0x10] sm:$0xff]
      %v487 = vld [vmem:[#allocation2 + $0x28] sm:$0xff]
      %v488 = vld [vmem:[#allocation2 + $0x30] sm:$0xff]
      %v489 = vld [vmem:[#allocation2 + $0x48] sm:$0xff]
      %v490 = vld [vmem:[#allocation2 + $0x50] sm:$0xff]
      %v491 = vld [vmem:[#allocation2 + $0x68] sm:$0xff]
      %v492 = vld [vmem:[#allocation2 + $0x70] sm:$0xff]
      %v493 = vld [vmem:[#allocation2 + $0x88] sm:$0xff]
      %v494 = vld [vmem:[#allocation2 + $0x90] sm:$0xff]
      %v495 = vld [vmem:[#allocation2 + $0xa8] sm:$0xff]
      %v496 = vld [vmem:[#allocation2 + $0xb0] sm:$0xff]
      %v497 = vld [vmem:[#allocation2 + $0xc8] sm:$0xff]
      %v498 = vld [vmem:[#allocation2 + $0xd0] sm:$0xff]
      %v499 = vld [vmem:[#allocation2 + $0xe8] sm:$0xff]
      %v500 = vld [vmem:[#allocation2 + $0xf0] sm:$0xff]
      %s501 = scalar_lea.vmem %s3, 4
      %v502 = vld [vmem:[%s501] sm:$0xf]
      %v504 = vsel %vm409, %v485, 0
      %v507 = vsel %vm409, %v486, 0
      %v510 = vsel %vm409, %v487, 0
      %v513 = vsel %vm409, %v488, 0
      %v516 = vsel %vm409, %v489, 0
      %v519 = vsel %vm409, %v490, 0
      %v522 = vsel %vm409, %v491, 0
      %v525 = vsel %vm409, %v492, 0
      %v528 = vsel %vm409, %v493, 0
      %v531 = vsel %vm409, %v494, 0
      %v534 = vsel %vm409, %v495, 0
      %v537 = vsel %vm409, %v496, 0
      %v540 = vsel %vm409, %v497, 0
      %v543 = vsel %vm409, %v498, 0
      %v546 = vsel %vm409, %v499, 0
      %v549 = vsel %vm409, %v500, 0
      %vm551 = vcmask 1043456
      %v553 = vsel %vm551, %v502, 0
      %555 = vmatprep.subr.mxu0 0.0
      %556 = vmatpush1.msra.mxu0 %v553
      %557 = vmatprep.subr.mxu0 0.0
      %558 = vmatpush1.msra.mxu0 0.0
      %559 = vmatprep.subr.mxu0 0.0
      %560 = vmatpush1.msra.mxu0 0.0
      %561 = vmatprep.subr.mxu0 0.0
      %562 = vmatpush1.msra.mxu0 0.0
      %563 = vmatprep.subr.mxu0 0.0
      %564 = vmatpush1.msra.mxu0 0.0
      %565 = vmatprep.subr.mxu0 0.0
      %566 = vmatpush1.msra.mxu0 0.0
      %567 = vmatprep.subr.mxu0 0.0
      %568 = vmatpush1.msra.mxu0 0.0
      %569 = vmatprep.subr.mxu0 0.0
      %570 = vmatpush1.msra.mxu0 0.0
      %571 = vmatprep.subr.mxu0 0.0
      %572 = vmatpush1.msra.mxu0 0.0
      %573 = vmatprep.subr.mxu0 0.0
      %574 = vmatpush1.msra.mxu0 0.0
      %575 = vmatprep.subr.mxu0 0.0
      %576 = vmatpush1.msra.mxu0 0.0
      %577 = vmatprep.subr.mxu0 0.0
      %578 = vmatpush1.msra.mxu0 0.0
      %579 = vmatprep.subr.mxu0 0.0
      %580 = vmatpush1.msra.mxu0 0.0
      %581 = vmatprep.subr.mxu0 0.0
      %582 = vmatpush1.msra.mxu0 0.0
      %583 = vmatprep.subr.mxu0 0.0
      %584 = vmatpush1.msra.mxu0 0.0
      %585 = vmatprep.subr.mxu0 0.0
      %586 = vmatpush1.msra.mxu0 0.0
      %587 = vmatprep.subr.mxu0 0.0
      %588 = vmatpush1.msra.mxu0 0.0
      %589 = vmatprep.subr.mxu0 0.0
      %590 = vmatpush1.msra.mxu0 0.0
      %591 = vmatprep.subr.mxu0 0.0
      %592 = vmatpush1.msra.mxu0 0.0
      %593 = vmatprep.subr.mxu0 0.0
      %594 = vmatpush1.msra.mxu0 0.0
      %595 = vmatprep.subr.mxu0 0.0
      %596 = vmatpush1.msra.mxu0 0.0
      %597 = vmatprep.subr.mxu0 0.0
      %598 = vmatpush1.msra.mxu0 0.0
      %599 = vmatprep.subr.mxu0 0.0
      %600 = vmatpush1.msra.mxu0 0.0
      %601 = vmatprep.subr.mxu0 0.0
      %602 = vmatpush1.msra.mxu0 0.0
      %603 = vmatprep.subr.mxu0 0.0
      %604 = vmatpush1.msra.mxu0 0.0
      %605 = vmatprep.subr.mxu0 0.0
      %606 = vmatpush1.msra.mxu0 0.0
      %607 = vmatprep.subr.mxu0 0.0
      %608 = vmatpush1.msra.mxu0 0.0
      %609 = vmatprep.subr.mxu0 0.0
      %610 = vmatpush1.msra.mxu0 0.0
      %611 = vmatprep.subr.mxu0 0.0
      %612 = vmatpush1.msra.mxu0 0.0
      %613 = vmatprep.subr.mxu0 0.0
      %614 = vmatpush1.msra.mxu0 0.0
      %615 = vmatprep.subr.mxu0 0.0
      %616 = vmatpush1.msra.mxu0 0.0
      %617 = vmatprep.subr.mxu0 0.0
      %618 = vmatpush1.msra.mxu0 0.0
      %619 = vmatprep.mubr.f32.mxu0 0.0
      %620 = vmatmul.mubr.f32.gmra.mrb[0].mxu0 %v504
      %v621 = vpop.f32.mrb[0].mxu0
      %v622 = vadd.f32 0.0, %v621
      %v623 = vpop.f32.mrb[0].mxu0
      %624 = vmatprep.mubr.f32.mxu0 0.0
      %625 = vmatmul.mubr.f32.gmra.mrb[0].mxu0 %v507
      %v626 = vpop.f32.mrb[0].mxu0
      %v627 = vadd.f32 0.0, %v626
      %v628 = vpop.f32.mrb[0].mxu0
      %629 = vmatprep.mubr.f32.mxu0 0.0
      %630 = vmatmul.mubr.f32.gmra.mrb[0].mxu0 %v510
      %v631 = vpop.f32.mrb[0].mxu0
      %v632 = vadd.f32 0.0, %v631
      %v633 = vpop.f32.mrb[0].mxu0
      %634 = vmatprep.mubr.f32.mxu0 0.0
      %635 = vmatmul.mubr.f32.gmra.mrb[0].mxu0 %v513
      %v636 = vpop.f32.mrb[0].mxu0
      %v637 = vadd.f32 0.0, %v636
      %v638 = vpop.f32.mrb[0].mxu0
      %639 = vmatprep.mubr.f32.mxu0 0.0
      %640 = vmatmul.mubr.f32.gmra.mrb[0].mxu0 %v516
      %v641 = vpop.f32.mrb[0].mxu0
      %v642 = vadd.f32 0.0, %v641
      %v643 = vpop.f32.mrb[0].mxu0
      %644 = vmatprep.mubr.f32.mxu0 0.0
      %645 = vmatmul.mubr.f32.gmra.mrb[0].mxu0 %v519
      %v646 = vpop.f32.mrb[0].mxu0
      %v647 = vadd.f32 0.0, %v646
      %v648 = vpop.f32.mrb[0].mxu0
      %649 = vmatprep.mubr.f32.mxu0 0.0
      %650 = vmatmul.mubr.f32.gmra.mrb[0].mxu0 %v522
      %v651 = vpop.f32.mrb[0].mxu0
      %v652 = vadd.f32 0.0, %v651
      %v653 = vpop.f32.mrb[0].mxu0
      %654 = vmatprep.mubr.f32.mxu0 0.0
      %655 = vmatmul.mubr.f32.gmra.mrb[0].mxu0 %v525
      %v656 = vpop.f32.mrb[0].mxu0
      %v657 = vadd.f32 0.0, %v656
      %v658 = vpop.f32.mrb[0].mxu0
      %659 = vmatprep.mubr.f32.mxu0 0.0
      %660 = vmatmul.mubr.f32.gmra.mrb[0].mxu0 %v528
      %v661 = vpop.f32.mrb[0].mxu0
      %v662 = vadd.f32 0.0, %v661
      %v663 = vpop.f32.mrb[0].mxu0
      %664 = vmatprep.mubr.f32.mxu0 0.0
      %665 = vmatmul.mubr.f32.gmra.mrb[0].mxu0 %v531
      %v666 = vpop.f32.mrb[0].mxu0
      %v667 = vadd.f32 0.0, %v666
      %v668 = vpop.f32.mrb[0].mxu0
      %669 = vmatprep.mubr.f32.mxu0 0.0
      %670 = vmatmul.mubr.f32.gmra.mrb[0].mxu0 %v534
      %v671 = vpop.f32.mrb[0].mxu0
      %v672 = vadd.f32 0.0, %v671
      %v673 = vpop.f32.mrb[0].mxu0
      %674 = vmatprep.mubr.f32.mxu0 0.0
      %675 = vmatmul.mubr.f32.gmra.mrb[0].mxu0 %v537
      %v676 = vpop.f32.mrb[0].mxu0
      %v677 = vadd.f32 0.0, %v676
      %v678 = vpop.f32.mrb[0].mxu0
      %679 = vmatprep.mubr.f32.mxu0 0.0
      %680 = vmatmul.mubr.f32.gmra.mrb[0].mxu0 %v540
      %v681 = vpop.f32.mrb[0].mxu0
      %v682 = vadd.f32 0.0, %v681
      %v683 = vpop.f32.mrb[0].mxu0
      %684 = vmatprep.mubr.f32.mxu0 0.0
      %685 = vmatmul.mubr.f32.gmra.mrb[0].mxu0 %v543
      %v686 = vpop.f32.mrb[0].mxu0
      %v687 = vadd.f32 0.0, %v686
      %v688 = vpop.f32.mrb[0].mxu0
      %689 = vmatprep.mubr.f32.mxu0 0.0
      %690 = vmatmul.mubr.f32.gmra.mrb[0].mxu0 %v546
      %v691 = vpop.f32.mrb[0].mxu0
      %v692 = vadd.f32 0.0, %v691
      %v693 = vpop.f32.mrb[0].mxu0
      %694 = vmatprep.mubr.f32.mxu0 0.0
      %695 = vmatmul.mubr.f32.gmra.mrb[0].mxu0 %v549
      %v696 = vpop.f32.mrb[0].mxu0
      %v697 = vadd.f32 0.0, %v696
      %v698 = vpop.f32.mrb[0].mxu0
      %699 = vdwg.mxu0
      %v701 = vsel %vm409, %v468, 0
      %v704 = vsel %vm409, %v469, 0
      %v707 = vsel %vm409, %v470, 0
      %v710 = vsel %vm409, %v471, 0
      %v713 = vsel %vm409, %v472, 0
      %v716 = vsel %vm409, %v473, 0
      %v719 = vsel %vm409, %v474, 0
      %v722 = vsel %vm409, %v475, 0
      %v725 = vsel %vm409, %v476, 0
      %v728 = vsel %vm409, %v477, 0
      %v731 = vsel %vm409, %v478, 0
      %v734 = vsel %vm409, %v479, 0
      %v737 = vsel %vm409, %v480, 0
      %v740 = vsel %vm409, %v481, 0
      %v743 = vsel %vm409, %v482, 0
      %v746 = vsel %vm409, %v483, 0
      %v749 = vsel %vm551, %v484, 0
      %751 = vmatprep.subr.mxu0 0.0
      %752 = vmatpush1.msra.mxu0 %v749
      %753 = vmatprep.subr.mxu0 0.0
      %754 = vmatpush1.msra.mxu0 0.0
      %755 = vmatprep.subr.mxu0 0.0
      %756 = vmatpush1.msra.mxu0 0.0
      %757 = vmatprep.subr.mxu0 0.0
      %758 = vmatpush1.msra.mxu0 0.0
      %759 = vmatprep.subr.mxu0 0.0
      %760 = vmatpush1.msra.mxu0 0.0
      %761 = vmatprep.subr.mxu0 0.0
      %762 = vmatpush1.msra.mxu0 0.0
      %763 = vmatprep.subr.mxu0 0.0
      %764 = vmatpush1.msra.mxu0 0.0
      %765 = vmatprep.subr.mxu0 0.0
      %766 = vmatpush1.msra.mxu0 0.0
      %767 = vmatprep.subr.mxu0 0.0
      %768 = vmatpush1.msra.mxu0 0.0
      %769 = vmatprep.subr.mxu0 0.0
      %770 = vmatpush1.msra.mxu0 0.0
      %771 = vmatprep.subr.mxu0 0.0
      %772 = vmatpush1.msra.mxu0 0.0
      %773 = vmatprep.subr.mxu0 0.0
      %774 = vmatpush1.msra.mxu0 0.0
      %775 = vmatprep.subr.mxu0 0.0
      %776 = vmatpush1.msra.mxu0 0.0
      %777 = vmatprep.subr.mxu0 0.0
      %778 = vmatpush1.msra.mxu0 0.0
      %779 = vmatprep.subr.mxu0 0.0
      %780 = vmatpush1.msra.mxu0 0.0
      %781 = vmatprep.subr.mxu0 0.0
      %782 = vmatpush1.msra.mxu0 0.0
      %783 = vmatprep.subr.mxu0 0.0
      %784 = vmatpush1.msra.mxu0 0.0
      %785 = vmatprep.subr.mxu0 0.0
      %786 = vmatpush1.msra.mxu0 0.0
      %787 = vmatprep.subr.mxu0 0.0
      %788 = vmatpush1.msra.mxu0 0.0
      %789 = vmatprep.subr.mxu0 0.0
      %790 = vmatpush1.msra.mxu0 0.0
      %791 = vmatprep.subr.mxu0 0.0
      %792 = vmatpush1.msra.mxu0 0.0
      %793 = vmatprep.subr.mxu0 0.0
      %794 = vmatpush1.msra.mxu0 0.0
      %795 = vmatprep.subr.mxu0 0.0
      %796 = vmatpush1.msra.mxu0 0.0
      %797 = vmatprep.subr.mxu0 0.0
      %798 = vmatpush1.msra.mxu0 0.0
      %799 = vmatprep.subr.mxu0 0.0
      %800 = vmatpush1.msra.mxu0 0.0
      %801 = vmatprep.subr.mxu0 0.0
      %802 = vmatpush1.msra.mxu0 0.0
      %803 = vmatprep.subr.mxu0 0.0
      %804 = vmatpush1.msra.mxu0 0.0
      %805 = vmatprep.subr.mxu0 0.0
      %806 = vmatpush1.msra.mxu0 0.0
      %807 = vmatprep.subr.mxu0 0.0
      %808 = vmatpush1.msra.mxu0 0.0
      %809 = vmatprep.subr.mxu0 0.0
      %810 = vmatpush1.msra.mxu0 0.0
      %811 = vmatprep.subr.mxu0 0.0
      %812 = vmatpush1.msra.mxu0 0.0
      %813 = vmatprep.subr.mxu0 0.0
      %814 = vmatpush1.msra.mxu0 0.0
      %815 = vmatprep.mubr.f32.mxu0 0.0
      %816 = vmatmul.mubr.f32.gmra.mrb[0].mxu0 %v701
      %v817 = vpop.f32.mrb[0].mxu0
      %v818 = vadd.f32 %v622, %v817
      %v819 = vpop.f32.mrb[0].mxu0
      %820 = vmatprep.mubr.f32.mxu0 0.0
      %821 = vmatmul.mubr.f32.gmra.mrb[0].mxu0 %v704
      %v822 = vpop.f32.mrb[0].mxu0
      %v823 = vadd.f32 %v627, %v822
      %v824 = vpop.f32.mrb[0].mxu0
      %825 = vmatprep.mubr.f32.mxu0 0.0
      %826 = vmatmul.mubr.f32.gmra.mrb[0].mxu0 %v707
      %v827 = vpop.f32.mrb[0].mxu0
      %v828 = vadd.f32 %v632, %v827
      %v829 = vpop.f32.mrb[0].mxu0
      %830 = vmatprep.mubr.f32.mxu0 0.0
      %831 = vmatmul.mubr.f32.gmra.mrb[0].mxu0 %v710
      %v832 = vpop.f32.mrb[0].mxu0
      %v833 = vadd.f32 %v637, %v832
      %v834 = vpop.f32.mrb[0].mxu0
      %835 = vmatprep.mubr.f32.mxu0 0.0
      %836 = vmatmul.mubr.f32.gmra.mrb[0].mxu0 %v713
      %v837 = vpop.f32.mrb[0].mxu0
      %v838 = vadd.f32 %v642, %v837
      %v839 = vpop.f32.mrb[0].mxu0
      %840 = vmatprep.mubr.f32.mxu0 0.0
      %841 = vmatmul.mubr.f32.gmra.mrb[0].mxu0 %v716
      %v842 = vpop.f32.mrb[0].mxu0
      %v843 = vadd.f32 %v647, %v842
      %v844 = vpop.f32.mrb[0].mxu0
      %845 = vmatprep.mubr.f32.mxu0 0.0
      %846 = vmatmul.mubr.f32.gmra.mrb[0].mxu0 %v719
      %v847 = vpop.f32.mrb[0].mxu0
      %v848 = vadd.f32 %v652, %v847
      %v849 = vpop.f32.mrb[0].mxu0
      %850 = vmatprep.mubr.f32.mxu0 0.0
      %851 = vmatmul.mubr.f32.gmra.mrb[0].mxu0 %v722
      %v852 = vpop.f32.mrb[0].mxu0
      %v853 = vadd.f32 %v657, %v852
      %v854 = vpop.f32.mrb[0].mxu0
      %855 = vmatprep.mubr.f32.mxu0 0.0
      %856 = vmatmul.mubr.f32.gmra.mrb[0].mxu0 %v725
      %v857 = vpop.f32.mrb[0].mxu0
      %v858 = vadd.f32 %v662, %v857
      %v859 = vpop.f32.mrb[0].mxu0
      %860 = vmatprep.mubr.f32.mxu0 0.0
      %861 = vmatmul.mubr.f32.gmra.mrb[0].mxu0 %v728
      %v862 = vpop.f32.mrb[0].mxu0
      %v863 = vadd.f32 %v667, %v862
      %v864 = vpop.f32.mrb[0].mxu0
      %865 = vmatprep.mubr.f32.mxu0 0.0
      %866 = vmatmul.mubr.f32.gmra.mrb[0].mxu0 %v731
      %v867 = vpop.f32.mrb[0].mxu0
      %v868 = vadd.f32 %v672, %v867
      %v869 = vpop.f32.mrb[0].mxu0
      %870 = vmatprep.mubr.f32.mxu0 0.0
      %871 = vmatmul.mubr.f32.gmra.mrb[0].mxu0 %v734
      %v872 = vpop.f32.mrb[0].mxu0
      %v873 = vadd.f32 %v677, %v872
      %v874 = vpop.f32.mrb[0].mxu0
      %875 = vmatprep.mubr.f32.mxu0 0.0
      %876 = vmatmul.mubr.f32.gmra.mrb[0].mxu0 %v737
      %v877 = vpop.f32.mrb[0].mxu0
      %v878 = vadd.f32 %v682, %v877
      %v879 = vpop.f32.mrb[0].mxu0
      %880 = vmatprep.mubr.f32.mxu0 0.0
      %881 = vmatmul.mubr.f32.gmra.mrb[0].mxu0 %v740
      %v882 = vpop.f32.mrb[0].mxu0
      %v883 = vadd.f32 %v687, %v882
      %v884 = vpop.f32.mrb[0].mxu0
      %885 = vmatprep.mubr.f32.mxu0 0.0
      %886 = vmatmul.mubr.f32.gmra.mrb[0].mxu0 %v743
      %v887 = vpop.f32.mrb[0].mxu0
      %v888 = vadd.f32 %v692, %v887
      %v889 = vpop.f32.mrb[0].mxu0
      %890 = vmatprep.mubr.f32.mxu0 0.0
      %891 = vmatmul.mubr.f32.gmra.mrb[0].mxu0 %v746
      %v892 = vpop.f32.mrb[0].mxu0
      %v893 = vadd.f32 %v697, %v892
      %v894 = vpop.f32.mrb[0].mxu0
      %895 = vdwg.mxu0
      %v896 = vld [vmem:[#allocation2 + $0x9] sm:$0xff]
      %v897 = vld [vmem:[#allocation2 + $0x11] sm:$0xff]
      %v898 = vld [vmem:[#allocation2 + $0x29] sm:$0xff]
      %v899 = vld [vmem:[#allocation2 + $0x31] sm:$0xff]
      %v900 = vld [vmem:[#allocation2 + $0x49] sm:$0xff]
      %v901 = vld [vmem:[#allocation2 + $0x51] sm:$0xff]
      %v902 = vld [vmem:[#allocation2 + $0x69] sm:$0xff]
      %v903 = vld [vmem:[#allocation2 + $0x71] sm:$0xff]
      %v904 = vld [vmem:[#allocation2 + $0x89] sm:$0xff]
      %v905 = vld [vmem:[#allocation2 + $0x91] sm:$0xff]
      %v906 = vld [vmem:[#allocation2 + $0xa9] sm:$0xff]
      %v907 = vld [vmem:[#allocation2 + $0xb1] sm:$0xff]
      %v908 = vld [vmem:[#allocation2 + $0xc9] sm:$0xff]
      %v909 = vld [vmem:[#allocation2 + $0xd1] sm:$0xff]
      %v910 = vld [vmem:[#allocation2 + $0xe9] sm:$0xff]
      %v911 = vld [vmem:[#allocation2 + $0xf1] sm:$0xff]
      %s912 = scalar_lea.vmem %s3, 8
      %v913 = vld [vmem:[%s912] sm:$0xf]
      %v915 = vsel %vm409, %v896, 0
      %v918 = vsel %vm409, %v897, 0
      %v921 = vsel %vm409, %v898, 0
      %v924 = vsel %vm409, %v899, 0
      %v927 = vsel %vm409, %v900, 0
      %v930 = vsel %vm409, %v901, 0
      %v933 = vsel %vm409, %v902, 0
      %v936 = vsel %vm409, %v903, 0
      %v939 = vsel %vm409, %v904, 0
      %v942 = vsel %vm409, %v905, 0
      %v945 = vsel %vm409, %v906, 0
      %v948 = vsel %vm409, %v907, 0
      %v951 = vsel %vm409, %v908, 0
      %v954 = vsel %vm409, %v909, 0
      %v957 = vsel %vm409, %v910, 0
      %v960 = vsel %vm409, %v911, 0
      %v963 = vsel %vm551, %v913, 0
      %965 = vmatprep.subr.mxu0 0.0
      %966 = vmatpush1.msra.mxu0 %v963
      %967 = vmatprep.subr.mxu0 0.0
      %968 = vmatpush1.msra.mxu0 0.0
      %969 = vmatprep.subr.mxu0 0.0
      %970 = vmatpush1.msra.mxu0 0.0
      %971 = vmatprep.subr.mxu0 0.0
      %972 = vmatpush1.msra.mxu0 0.0
      %973 = vmatprep.subr.mxu0 0.0
      %974 = vmatpush1.msra.mxu0 0.0
      %975 = vmatprep.subr.mxu0 0.0
      %976 = vmatpush1.msra.mxu0 0.0
      %977 = vmatprep.subr.mxu0 0.0
      %978 = vmatpush1.msra.mxu0 0.0
      %979 = vmatprep.subr.mxu0 0.0
      %980 = vmatpush1.msra.mxu0 0.0
      %981 = vmatprep.subr.mxu0 0.0
      %982 = vmatpush1.msra.mxu0 0.0
      %983 = vmatprep.subr.mxu0 0.0
      %984 = vmatpush1.msra.mxu0 0.0
      %985 = vmatprep.subr.mxu0 0.0
      %986 = vmatpush1.msra.mxu0 0.0
      %987 = vmatprep.subr.mxu0 0.0
      %988 = vmatpush1.msra.mxu0 0.0
      %989 = vmatprep.subr.mxu0 0.0
      %990 = vmatpush1.msra.mxu0 0.0
      %991 = vmatprep.subr.mxu0 0.0
      %992 = vmatpush1.msra.mxu0 0.0
      %993 = vmatprep.subr.mxu0 0.0
      %994 = vmatpush1.msra.mxu0 0.0
      %995 = vmatprep.subr.mxu0 0.0
      %996 = vmatpush1.msra.mxu0 0.0
      %997 = vmatprep.subr.mxu0 0.0
      %998 = vmatpush1.msra.mxu0 0.0
      %999 = vmatprep.subr.mxu0 0.0
      %1000 = vmatpush1.msra.mxu0 0.0
      %1001 = vmatprep.subr.mxu0 0.0
      %1002 = vmatpush1.msra.mxu0 0.0
      %1003 = vmatprep.subr.mxu0 0.0
      %1004 = vmatpush1.msra.mxu0 0.0
      %1005 = vmatprep.subr.mxu0 0.0
      %1006 = vmatpush1.msra.mxu0 0.0
      %1007 = vmatprep.subr.mxu0 0.0
      %1008 = vmatpush1.msra.mxu0 0.0
      %1009 = vmatprep.subr.mxu0 0.0
      %1010 = vmatpush1.msra.mxu0 0.0
      %1011 = vmatprep.subr.mxu0 0.0
      %1012 = vmatpush1.msra.mxu0 0.0
      %1013 = vmatprep.subr.mxu0 0.0
      %1014 = vmatpush1.msra.mxu0 0.0
      %1015 = vmatprep.subr.mxu0 0.0
      %1016 = vmatpush1.msra.mxu0 0.0
      %1017 = vmatprep.subr.mxu0 0.0
      %1018 = vmatpush1.msra.mxu0 0.0
      %1019 = vmatprep.subr.mxu0 0.0
      %1020 = vmatpush1.msra.mxu0 0.0
      %1021 = vmatprep.subr.mxu0 0.0
      %1022 = vmatpush1.msra.mxu0 0.0
      %1023 = vmatprep.subr.mxu0 0.0
      %1024 = vmatpush1.msra.mxu0 0.0
      %1025 = vmatprep.subr.mxu0 0.0
      %1026 = vmatpush1.msra.mxu0 0.0
      %1027 = vmatprep.subr.mxu0 0.0
      %1028 = vmatpush1.msra.mxu0 0.0
      %1029 = vmatprep.mubr.f32.mxu0 0.0
      %1030 = vmatmul.mubr.f32.gmra.mrb[0].mxu0 %v915
      %v1031 = vpop.f32.mrb[0].mxu0
      %v1032 = vadd.f32 0.0, %v1031
      %v1033 = vpop.f32.mrb[0].mxu0
      %1034 = vmatprep.mubr.f32.mxu0 0.0
      %1035 = vmatmul.mubr.f32.gmra.mrb[0].mxu0 %v918
      %v1036 = vpop.f32.mrb[0].mxu0
      %v1037 = vadd.f32 0.0, %v1036
      %v1038 = vpop.f32.mrb[0].mxu0
      %1039 = vmatprep.mubr.f32.mxu0 0.0
      %1040 = vmatmul.mubr.f32.gmra.mrb[0].mxu0 %v921
      %v1041 = vpop.f32.mrb[0].mxu0
      %v1042 = vadd.f32 0.0, %v1041
      %v1043 = vpop.f32.mrb[0].mxu0
      %1044 = vmatprep.mubr.f32.mxu0 0.0
      %1045 = vmatmul.mubr.f32.gmra.mrb[0].mxu0 %v924
      %v1046 = vpop.f32.mrb[0].mxu0
      %v1047 = vadd.f32 0.0, %v1046
      %v1048 = vpop.f32.mrb[0].mxu0
      %1049 = vmatprep.mubr.f32.mxu0 0.0
      %1050 = vmatmul.mubr.f32.gmra.mrb[0].mxu0 %v927
      %v1051 = vpop.f32.mrb[0].mxu0
      %v1052 = vadd.f32 0.0, %v1051
      %v1053 = vpop.f32.mrb[0].mxu0
      %1054 = vmatprep.mubr.f32.mxu0 0.0
      %1055 = vmatmul.mubr.f32.gmra.mrb[0].mxu0 %v930
      %v1056 = vpop.f32.mrb[0].mxu0
      %v1057 = vadd.f32 0.0, %v1056
      %v1058 = vpop.f32.mrb[0].mxu0
      %1059 = vmatprep.mubr.f32.mxu0 0.0
      %1060 = vmatmul.mubr.f32.gmra.mrb[0].mxu0 %v933
      %v1061 = vpop.f32.mrb[0].mxu0
      %v1062 = vadd.f32 0.0, %v1061
      %v1063 = vpop.f32.mrb[0].mxu0
      %1064 = vmatprep.mubr.f32.mxu0 0.0
      %1065 = vmatmul.mubr.f32.gmra.mrb[0].mxu0 %v936
      %v1066 = vpop.f32.mrb[0].mxu0
      %v1067 = vadd.f32 0.0, %v1066
      %v1068 = vpop.f32.mrb[0].mxu0
      %1069 = vmatprep.mubr.f32.mxu0 0.0
      %1070 = vmatmul.mubr.f32.gmra.mrb[0].mxu0 %v939
      %v1071 = vpop.f32.mrb[0].mxu0
      %v1072 = vadd.f32 0.0, %v1071
      %v1073 = vpop.f32.mrb[0].mxu0
      %1074 = vmatprep.mubr.f32.mxu0 0.0
      %1075 = vmatmul.mubr.f32.gmra.mrb[0].mxu0 %v942
      %v1076 = vpop.f32.mrb[0].mxu0
      %v1077 = vadd.f32 0.0, %v1076
      %v1078 = vpop.f32.mrb[0].mxu0
      %1079 = vmatprep.mubr.f32.mxu0 0.0
      %1080 = vmatmul.mubr.f32.gmra.mrb[0].mxu0 %v945
      %v1081 = vpop.f32.mrb[0].mxu0
      %v1082 = vadd.f32 0.0, %v1081
      %v1083 = vpop.f32.mrb[0].mxu0
      %1084 = vmatprep.mubr.f32.mxu0 0.0
      %1085 = vmatmul.mubr.f32.gmra.mrb[0].mxu0 %v948
      %v1086 = vpop.f32.mrb[0].mxu0
      %v1087 = vadd.f32 0.0, %v1086
      %v1088 = vpop.f32.mrb[0].mxu0
      %1089 = vmatprep.mubr.f32.mxu0 0.0
      %1090 = vmatmul.mubr.f32.gmra.mrb[0].mxu0 %v951
      %v1091 = vpop.f32.mrb[0].mxu0
      %v1092 = vadd.f32 0.0, %v1091
      %v1093 = vpop.f32.mrb[0].mxu0
      %1094 = vmatprep.mubr.f32.mxu0 0.0
      %1095 = vmatmul.mubr.f32.gmra.mrb[0].mxu0 %v954
      %v1096 = vpop.f32.mrb[0].mxu0
      %v1097 = vadd.f32 0.0, %v1096
      %v1098 = vpop.f32.mrb[0].mxu0
      %1099 = vmatprep.mubr.f32.mxu0 0.0
      %1100 = vmatmul.mubr.f32.gmra.mrb[0].mxu0 %v957
      %v1101 = vpop.f32.mrb[0].mxu0
      %v1102 = vadd.f32 0.0, %v1101
      %v1103 = vpop.f32.mrb[0].mxu0
      %1104 = vmatprep.mubr.f32.mxu0 0.0
      %1105 = vmatmul.mubr.f32.gmra.mrb[0].mxu0 %v960
      %v1106 = vpop.f32.mrb[0].mxu0
      %v1107 = vadd.f32 0.0, %v1106
      %v1108 = vpop.f32.mrb[0].mxu0
      %1109 = vdwg.mxu0
      %v1110 = vadd.f32 %v818, %v1032
      %v1111 = vadd.f32 %v823, %v1037
      %v1112 = vadd.f32 %v828, %v1042
      %v1113 = vadd.f32 %v833, %v1047
      %v1114 = vadd.f32 %v838, %v1052
      %v1115 = vadd.f32 %v843, %v1057
      %v1116 = vadd.f32 %v848, %v1062
      %v1117 = vadd.f32 %v853, %v1067
      %v1118 = vadd.f32 %v858, %v1072
      %v1119 = vadd.f32 %v863, %v1077
      %v1120 = vadd.f32 %v868, %v1082
      %v1121 = vadd.f32 %v873, %v1087
      %v1122 = vadd.f32 %v878, %v1092
      %v1123 = vadd.f32 %v883, %v1097
      %v1124 = vadd.f32 %v888, %v1102
      %v1125 = vadd.f32 %v893, %v1107
      %v1126 = vld [vmem:[%s448 + $0x7] sm:$0xff]
      %v1127 = vld [vmem:[%s448 + $0xf] sm:$0xff]
      %v1128 = vld [vmem:[%s448 + $0x27] sm:$0xff]
      %v1129 = vld [vmem:[%s448 + $0x2f] sm:$0xff]
      %v1130 = vld [vmem:[%s448 + $0x47] sm:$0xff]
      %v1131 = vld [vmem:[%s448 + $0x4f] sm:$0xff]
      %v1132 = vld [vmem:[%s448 + $0x67] sm:$0xff]
      %v1133 = vld [vmem:[%s448 + $0x6f] sm:$0xff]
      %v1134 = vld [vmem:[%s448 + $0x87] sm:$0xff]
      %v1135 = vld [vmem:[%s448 + $0x8f] sm:$0xff]
      %v1136 = vld [vmem:[%s448 + $0xa7] sm:$0xff]
      %v1137 = vld [vmem:[%s448 + $0xaf] sm:$0xff]
      %v1138 = vld [vmem:[%s448 + $0xc7] sm:$0xff]
      %v1139 = vld [vmem:[%s448 + $0xcf] sm:$0xff]
      %v1140 = vld [vmem:[%s448 + $0xe7] sm:$0xff]
      %v1141 = vld [vmem:[%s448 + $0xef] sm:$0xff]
      %s1142 = scalar_lea.vmem %s3, 12
      %v1143 = vld [vmem:[%s1142] sm:$0xf]
      %v1145 = vsel %vm409, %v1126, 0
      %v1148 = vsel %vm409, %v1127, 0
      %v1151 = vsel %vm409, %v1128, 0
      %v1154 = vsel %vm409, %v1129, 0
      %v1157 = vsel %vm409, %v1130, 0
      %v1160 = vsel %vm409, %v1131, 0
      %v1163 = vsel %vm409, %v1132, 0
      %v1166 = vsel %vm409, %v1133, 0
      %v1169 = vsel %vm409, %v1134, 0
      %v1172 = vsel %vm409, %v1135, 0
      %v1175 = vsel %vm409, %v1136, 0
      %v1178 = vsel %vm409, %v1137, 0
      %v1181 = vsel %vm409, %v1138, 0
      %v1184 = vsel %vm409, %v1139, 0
      %v1187 = vsel %vm409, %v1140, 0
      %v1190 = vsel %vm409, %v1141, 0
      %v1193 = vsel %vm551, %v1143, 0
      %1195 = vmatprep.subr.mxu0 0.0
      %1196 = vmatpush1.msra.mxu0 %v1193
      %1197 = vmatprep.subr.mxu0 0.0
      %1198 = vmatpush1.msra.mxu0 0.0
      %1199 = vmatprep.subr.mxu0 0.0
      %1200 = vmatpush1.msra.mxu0 0.0
      %1201 = vmatprep.subr.mxu0 0.0
      %1202 = vmatpush1.msra.mxu0 0.0
      %1203 = vmatprep.subr.mxu0 0.0
      %1204 = vmatpush1.msra.mxu0 0.0
      %1205 = vmatprep.subr.mxu0 0.0
      %1206 = vmatpush1.msra.mxu0 0.0
      %1207 = vmatprep.subr.mxu0 0.0
      %1208 = vmatpush1.msra.mxu0 0.0
      %1209 = vmatprep.subr.mxu0 0.0
      %1210 = vmatpush1.msra.mxu0 0.0
      %1211 = vmatprep.subr.mxu0 0.0
      %1212 = vmatpush1.msra.mxu0 0.0
      %1213 = vmatprep.subr.mxu0 0.0
      %1214 = vmatpush1.msra.mxu0 0.0
      %1215 = vmatprep.subr.mxu0 0.0
      %1216 = vmatpush1.msra.mxu0 0.0
      %1217 = vmatprep.subr.mxu0 0.0
      %1218 = vmatpush1.msra.mxu0 0.0
      %1219 = vmatprep.subr.mxu0 0.0
      %1220 = vmatpush1.msra.mxu0 0.0
      %1221 = vmatprep.subr.mxu0 0.0
      %1222 = vmatpush1.msra.mxu0 0.0
      %1223 = vmatprep.subr.mxu0 0.0
      %1224 = vmatpush1.msra.mxu0 0.0
      %1225 = vmatprep.subr.mxu0 0.0
      %1226 = vmatpush1.msra.mxu0 0.0
      %1227 = vmatprep.subr.mxu0 0.0
      %1228 = vmatpush1.msra.mxu0 0.0
      %1229 = vmatprep.subr.mxu0 0.0
      %1230 = vmatpush1.msra.mxu0 0.0
      %1231 = vmatprep.subr.mxu0 0.0
      %1232 = vmatpush1.msra.mxu0 0.0
      %1233 = vmatprep.subr.mxu0 0.0
      %1234 = vmatpush1.msra.mxu0 0.0
      %1235 = vmatprep.subr.mxu0 0.0
      %1236 = vmatpush1.msra.mxu0 0.0
      %1237 = vmatprep.subr.mxu0 0.0
      %1238 = vmatpush1.msra.mxu0 0.0
      %1239 = vmatprep.subr.mxu0 0.0
      %1240 = vmatpush1.msra.mxu0 0.0
      %1241 = vmatprep.subr.mxu0 0.0
      %1242 = vmatpush1.msra.mxu0 0.0
      %1243 = vmatprep.subr.mxu0 0.0
      %1244 = vmatpush1.msra.mxu0 0.0
      %1245 = vmatprep.subr.mxu0 0.0
      %1246 = vmatpush1.msra.mxu0 0.0
      %1247 = vmatprep.subr.mxu0 0.0
      %1248 = vmatpush1.msra.mxu0 0.0
      %1249 = vmatprep.subr.mxu0 0.0
      %1250 = vmatpush1.msra.mxu0 0.0
      %1251 = vmatprep.subr.mxu0 0.0
      %1252 = vmatpush1.msra.mxu0 0.0
      %1253 = vmatprep.subr.mxu0 0.0
      %1254 = vmatpush1.msra.mxu0 0.0
      %1255 = vmatprep.subr.mxu0 0.0
      %1256 = vmatpush1.msra.mxu0 0.0
      %1257 = vmatprep.subr.mxu0 0.0
      %1258 = vmatpush1.msra.mxu0 0.0
      %1259 = vmatprep.mubr.f32.mxu0 0.0
      %1260 = vmatmul.mubr.f32.gmra.mrb[0].mxu0 %v1145
      %v1261 = vpop.f32.mrb[0].mxu0
      %v1262 = vadd.f32 0.0, %v1261
      %v1263 = vpop.f32.mrb[0].mxu0
      %1264 = vmatprep.mubr.f32.mxu0 0.0
      %1265 = vmatmul.mubr.f32.gmra.mrb[0].mxu0 %v1148
      %v1266 = vpop.f32.mrb[0].mxu0
      %v1267 = vadd.f32 0.0, %v1266
      %v1268 = vpop.f32.mrb[0].mxu0
      %1269 = vmatprep.mubr.f32.mxu0 0.0
      %1270 = vmatmul.mubr.f32.gmra.mrb[0].mxu0 %v1151
      %v1271 = vpop.f32.mrb[0].mxu0
      %v1272 = vadd.f32 0.0, %v1271
      %v1273 = vpop.f32.mrb[0].mxu0
      %1274 = vmatprep.mubr.f32.mxu0 0.0
      %1275 = vmatmul.mubr.f32.gmra.mrb[0].mxu0 %v1154
      %v1276 = vpop.f32.mrb[0].mxu0
      %v1277 = vadd.f32 0.0, %v1276
      %v1278 = vpop.f32.mrb[0].mxu0
      %1279 = vmatprep.mubr.f32.mxu0 0.0
      %1280 = vmatmul.mubr.f32.gmra.mrb[0].mxu0 %v1157
      %v1281 = vpop.f32.mrb[0].mxu0
      %v1282 = vadd.f32 0.0, %v1281
      %v1283 = vpop.f32.mrb[0].mxu0
      %1284 = vmatprep.mubr.f32.mxu0 0.0
      %1285 = vmatmul.mubr.f32.gmra.mrb[0].mxu0 %v1160
      %v1286 = vpop.f32.mrb[0].mxu0
      %v1287 = vadd.f32 0.0, %v1286
      %v1288 = vpop.f32.mrb[0].mxu0
      %1289 = vmatprep.mubr.f32.mxu0 0.0
      %1290 = vmatmul.mubr.f32.gmra.mrb[0].mxu0 %v1163
      %v1291 = vpop.f32.mrb[0].mxu0
      %v1292 = vadd.f32 0.0, %v1291
      %v1293 = vpop.f32.mrb[0].mxu0
      %1294 = vmatprep.mubr.f32.mxu0 0.0
      %1295 = vmatmul.mubr.f32.gmra.mrb[0].mxu0 %v1166
      %v1296 = vpop.f32.mrb[0].mxu0
      %v1297 = vadd.f32 0.0, %v1296
      %v1298 = vpop.f32.mrb[0].mxu0
      %1299 = vmatprep.mubr.f32.mxu0 0.0
      %1300 = vmatmul.mubr.f32.gmra.mrb[0].mxu0 %v1169
      %v1301 = vpop.f32.mrb[0].mxu0
      %v1302 = vadd.f32 0.0, %v1301
      %v1303 = vpop.f32.mrb[0].mxu0
      %1304 = vmatprep.mubr.f32.mxu0 0.0
      %1305 = vmatmul.mubr.f32.gmra.mrb[0].mxu0 %v1172
      %v1306 = vpop.f32.mrb[0].mxu0
      %v1307 = vadd.f32 0.0, %v1306
      %v1308 = vpop.f32.mrb[0].mxu0
      %1309 = vmatprep.mubr.f32.mxu0 0.0
      %1310 = vmatmul.mubr.f32.gmra.mrb[0].mxu0 %v1175
      %v1311 = vpop.f32.mrb[0].mxu0
      %v1312 = vadd.f32 0.0, %v1311
      %v1313 = vpop.f32.mrb[0].mxu0
      %1314 = vmatprep.mubr.f32.mxu0 0.0
      %1315 = vmatmul.mubr.f32.gmra.mrb[0].mxu0 %v1178
      %v1316 = vpop.f32.mrb[0].mxu0
      %v1317 = vadd.f32 0.0, %v1316
      %v1318 = vpop.f32.mrb[0].mxu0
      %1319 = vmatprep.mubr.f32.mxu0 0.0
      %1320 = vmatmul.mubr.f32.gmra.mrb[0].mxu0 %v1181
      %v1321 = vpop.f32.mrb[0].mxu0
      %v1322 = vadd.f32 0.0, %v1321
      %v1323 = vpop.f32.mrb[0].mxu0
      %1324 = vmatprep.mubr.f32.mxu0 0.0
      %1325 = vmatmul.mubr.f32.gmra.mrb[0].mxu0 %v1184
      %v1326 = vpop.f32.mrb[0].mxu0
      %v1327 = vadd.f32 0.0, %v1326
      %v1328 = vpop.f32.mrb[0].mxu0
      %1329 = vmatprep.mubr.f32.mxu0 0.0
      %1330 = vmatmul.mubr.f32.gmra.mrb[0].mxu0 %v1187
      %v1331 = vpop.f32.mrb[0].mxu0
      %v1332 = vadd.f32 0.0, %v1331
      %v1333 = vpop.f32.mrb[0].mxu0
      %1334 = vmatprep.mubr.f32.mxu0 0.0
      %1335 = vmatmul.mubr.f32.gmra.mrb[0].mxu0 %v1190
      %v1336 = vpop.f32.mrb[0].mxu0
      %v1337 = vadd.f32 0.0, %v1336
      %v1338 = vpop.f32.mrb[0].mxu0
      %1339 = vdwg.mxu0
      %v1340 = vadd.f32 %v1110, %v1262
      %v1341 = vadd.f32 %v1111, %v1267
      %v1342 = vadd.f32 %v1112, %v1272
      %v1343 = vadd.f32 %v1113, %v1277
      %v1344 = vadd.f32 %v1114, %v1282
      %v1345 = vadd.f32 %v1115, %v1287
      %v1346 = vadd.f32 %v1116, %v1292
      %v1347 = vadd.f32 %v1117, %v1297
      %v1348 = vadd.f32 %v1118, %v1302
      %v1349 = vadd.f32 %v1119, %v1307
      %v1350 = vadd.f32 %v1120, %v1312
      %v1351 = vadd.f32 %v1121, %v1317
      %v1352 = vadd.f32 %v1122, %v1322
      %v1353 = vadd.f32 %v1123, %v1327
      %v1354 = vadd.f32 %v1124, %v1332
      %v1355 = vadd.f32 %v1125, %v1337
      %v1356 = vld [vmem:[%s448 + $0x8] sm:$0xff]
      %v1357 = vld [vmem:[%s448 + $0x10] sm:$0xff]
      %v1358 = vld [vmem:[%s448 + $0x28] sm:$0xff]
      %v1359 = vld [vmem:[%s448 + $0x30] sm:$0xff]
      %v1360 = vld [vmem:[%s448 + $0x48] sm:$0xff]
      %v1361 = vld [vmem:[%s448 + $0x50] sm:$0xff]
      %v1362 = vld [vmem:[%s448 + $0x68] sm:$0xff]
      %v1363 = vld [vmem:[%s448 + $0x70] sm:$0xff]
      %v1364 = vld [vmem:[%s448 + $0x88] sm:$0xff]
      %v1365 = vld [vmem:[%s448 + $0x90] sm:$0xff]
      %v1366 = vld [vmem:[%s448 + $0xa8] sm:$0xff]
      %v1367 = vld [vmem:[%s448 + $0xb0] sm:$0xff]
      %v1368 = vld [vmem:[%s448 + $0xc8] sm:$0xff]
      %v1369 = vld [vmem:[%s448 + $0xd0] sm:$0xff]
      %v1370 = vld [vmem:[%s448 + $0xe8] sm:$0xff]
      %v1371 = vld [vmem:[%s448 + $0xf0] sm:$0xff]
      %s1372 = scalar_lea.vmem %s3, 16
      %v1373 = vld [vmem:[%s1372] sm:$0xf]
      %v1375 = vsel %vm409, %v1356, 0
      %v1378 = vsel %vm409, %v1357, 0
      %v1381 = vsel %vm409, %v1358, 0
      %v1384 = vsel %vm409, %v1359, 0
      %v1387 = vsel %vm409, %v1360, 0
      %v1390 = vsel %vm409, %v1361, 0
      %v1393 = vsel %vm409, %v1362, 0
      %v1396 = vsel %vm409, %v1363, 0
      %v1399 = vsel %vm409, %v1364, 0
      %v1402 = vsel %vm409, %v1365, 0
      %v1405 = vsel %vm409, %v1366, 0
      %v1408 = vsel %vm409, %v1367, 0
      %v1411 = vsel %vm409, %v1368, 0
      %v1414 = vsel %vm409, %v1369, 0
      %v1417 = vsel %vm409, %v1370, 0
      %v1420 = vsel %vm409, %v1371, 0
      %v1423 = vsel %vm551, %v1373, 0
      %1425 = vmatprep.subr.mxu0 0.0
      %1426 = vmatpush1.msra.mxu0 %v1423
      %1427 = vmatprep.subr.mxu0 0.0
      %1428 = vmatpush1.msra.mxu0 0.0
      %1429 = vmatprep.subr.mxu0 0.0
      %1430 = vmatpush1.msra.mxu0 0.0
      %1431 = vmatprep.subr.mxu0 0.0
      %1432 = vmatpush1.msra.mxu0 0.0
      %1433 = vmatprep.subr.mxu0 0.0
      %1434 = vmatpush1.msra.mxu0 0.0
      %1435 = vmatprep.subr.mxu0 0.0
      %1436 = vmatpush1.msra.mxu0 0.0
      %1437 = vmatprep.subr.mxu0 0.0
      %1438 = vmatpush1.msra.mxu0 0.0
      %1439 = vmatprep.subr.mxu0 0.0
      %1440 = vmatpush1.msra.mxu0 0.0
      %1441 = vmatprep.subr.mxu0 0.0
      %1442 = vmatpush1.msra.mxu0 0.0
      %1443 = vmatprep.subr.mxu0 0.0
      %1444 = vmatpush1.msra.mxu0 0.0
      %1445 = vmatprep.subr.mxu0 0.0
      %1446 = vmatpush1.msra.mxu0 0.0
      %1447 = vmatprep.subr.mxu0 0.0
      %1448 = vmatpush1.msra.mxu0 0.0
      %1449 = vmatprep.subr.mxu0 0.0
      %1450 = vmatpush1.msra.mxu0 0.0
      %1451 = vmatprep.subr.mxu0 0.0
      %1452 = vmatpush1.msra.mxu0 0.0
      %1453 = vmatprep.subr.mxu0 0.0
      %1454 = vmatpush1.msra.mxu0 0.0
      %1455 = vmatprep.subr.mxu0 0.0
      %1456 = vmatpush1.msra.mxu0 0.0
      %1457 = vmatprep.subr.mxu0 0.0
      %1458 = vmatpush1.msra.mxu0 0.0
      %1459 = vmatprep.subr.mxu0 0.0
      %1460 = vmatpush1.msra.mxu0 0.0
      %1461 = vmatprep.subr.mxu0 0.0
      %1462 = vmatpush1.msra.mxu0 0.0
      %1463 = vmatprep.subr.mxu0 0.0
      %1464 = vmatpush1.msra.mxu0 0.0
      %1465 = vmatprep.subr.mxu0 0.0
      %1466 = vmatpush1.msra.mxu0 0.0
      %1467 = vmatprep.subr.mxu0 0.0
      %1468 = vmatpush1.msra.mxu0 0.0
      %1469 = vmatprep.subr.mxu0 0.0
      %1470 = vmatpush1.msra.mxu0 0.0
      %1471 = vmatprep.subr.mxu0 0.0
      %1472 = vmatpush1.msra.mxu0 0.0
      %1473 = vmatprep.subr.mxu0 0.0
      %1474 = vmatpush1.msra.mxu0 0.0
      %1475 = vmatprep.subr.mxu0 0.0
      %1476 = vmatpush1.msra.mxu0 0.0
      %1477 = vmatprep.subr.mxu0 0.0
      %1478 = vmatpush1.msra.mxu0 0.0
      %1479 = vmatprep.subr.mxu0 0.0
      %1480 = vmatpush1.msra.mxu0 0.0
      %1481 = vmatprep.subr.mxu0 0.0
      %1482 = vmatpush1.msra.mxu0 0.0
      %1483 = vmatprep.subr.mxu0 0.0
      %1484 = vmatpush1.msra.mxu0 0.0
      %1485 = vmatprep.subr.mxu0 0.0
      %1486 = vmatpush1.msra.mxu0 0.0
      %1487 = vmatprep.subr.mxu0 0.0
      %1488 = vmatpush1.msra.mxu0 0.0
      %1489 = vmatprep.mubr.f32.mxu0 0.0
      %1490 = vmatmul.mubr.f32.gmra.mrb[0].mxu0 %v1375
      %v1491 = vpop.f32.mrb[0].mxu0
      %v1492 = vadd.f32 0.0, %v1491
      %v1493 = vpop.f32.mrb[0].mxu0
      %1494 = vmatprep.mubr.f32.mxu0 0.0
      %1495 = vmatmul.mubr.f32.gmra.mrb[0].mxu0 %v1378
      %v1496 = vpop.f32.mrb[0].mxu0
      %v1497 = vadd.f32 0.0, %v1496
      %v1498 = vpop.f32.mrb[0].mxu0
      %1499 = vmatprep.mubr.f32.mxu0 0.0
      %1500 = vmatmul.mubr.f32.gmra.mrb[0].mxu0 %v1381
      %v1501 = vpop.f32.mrb[0].mxu0
      %v1502 = vadd.f32 0.0, %v1501
      %v1503 = vpop.f32.mrb[0].mxu0
      %1504 = vmatprep.mubr.f32.mxu0 0.0
      %1505 = vmatmul.mubr.f32.gmra.mrb[0].mxu0 %v1384
      %v1506 = vpop.f32.mrb[0].mxu0
      %v1507 = vadd.f32 0.0, %v1506
      %v1508 = vpop.f32.mrb[0].mxu0
      %1509 = vmatprep.mubr.f32.mxu0 0.0
      %1510 = vmatmul.mubr.f32.gmra.mrb[0].mxu0 %v1387
      %v1511 = vpop.f32.mrb[0].mxu0
      %v1512 = vadd.f32 0.0, %v1511
      %v1513 = vpop.f32.mrb[0].mxu0
      %1514 = vmatprep.mubr.f32.mxu0 0.0
      %1515 = vmatmul.mubr.f32.gmra.mrb[0].mxu0 %v1390
      %v1516 = vpop.f32.mrb[0].mxu0
      %v1517 = vadd.f32 0.0, %v1516
      %v1518 = vpop.f32.mrb[0].mxu0
      %1519 = vmatprep.mubr.f32.mxu0 0.0
      %1520 = vmatmul.mubr.f32.gmra.mrb[0].mxu0 %v1393
      %v1521 = vpop.f32.mrb[0].mxu0
      %v1522 = vadd.f32 0.0, %v1521
      %v1523 = vpop.f32.mrb[0].mxu0
      %1524 = vmatprep.mubr.f32.mxu0 0.0
      %1525 = vmatmul.mubr.f32.gmra.mrb[0].mxu0 %v1396
      %v1526 = vpop.f32.mrb[0].mxu0
      %v1527 = vadd.f32 0.0, %v1526
      %v1528 = vpop.f32.mrb[0].mxu0
      %1529 = vmatprep.mubr.f32.mxu0 0.0
      %1530 = vmatmul.mubr.f32.gmra.mrb[0].mxu0 %v1399
      %v1531 = vpop.f32.mrb[0].mxu0
      %v1532 = vadd.f32 0.0, %v1531
      %v1533 = vpop.f32.mrb[0].mxu0
      %1534 = vmatprep.mubr.f32.mxu0 0.0
      %1535 = vmatmul.mubr.f32.gmra.mrb[0].mxu0 %v1402
      %v1536 = vpop.f32.mrb[0].mxu0
      %v1537 = vadd.f32 0.0, %v1536
      %v1538 = vpop.f32.mrb[0].mxu0
      %1539 = vmatprep.mubr.f32.mxu0 0.0
      %1540 = vmatmul.mubr.f32.gmra.mrb[0].mxu0 %v1405
      %v1541 = vpop.f32.mrb[0].mxu0
      %v1542 = vadd.f32 0.0, %v1541
      %v1543 = vpop.f32.mrb[0].mxu0
      %1544 = vmatprep.mubr.f32.mxu0 0.0
      %1545 = vmatmul.mubr.f32.gmra.mrb[0].mxu0 %v1408
      %v1546 = vpop.f32.mrb[0].mxu0
      %v1547 = vadd.f32 0.0, %v1546
      %v1548 = vpop.f32.mrb[0].mxu0
      %1549 = vmatprep.mubr.f32.mxu0 0.0
      %1550 = vmatmul.mubr.f32.gmra.mrb[0].mxu0 %v1411
      %v1551 = vpop.f32.mrb[0].mxu0
      %v1552 = vadd.f32 0.0, %v1551
      %v1553 = vpop.f32.mrb[0].mxu0
      %1554 = vmatprep.mubr.f32.mxu0 0.0
      %1555 = vmatmul.mubr.f32.gmra.mrb[0].mxu0 %v1414
      %v1556 = vpop.f32.mrb[0].mxu0
      %v1557 = vadd.f32 0.0, %v1556
      %v1558 = vpop.f32.mrb[0].mxu0
      %1559 = vmatprep.mubr.f32.mxu0 0.0
      %1560 = vmatmul.mubr.f32.gmra.mrb[0].mxu0 %v1417
      %v1561 = vpop.f32.mrb[0].mxu0
      %v1562 = vadd.f32 0.0, %v1561
      %v1563 = vpop.f32.mrb[0].mxu0
      %1564 = vmatprep.mubr.f32.mxu0 0.0
      %1565 = vmatmul.mubr.f32.gmra.mrb[0].mxu0 %v1420
      %v1566 = vpop.f32.mrb[0].mxu0
      %v1567 = vadd.f32 0.0, %v1566
      %v1568 = vpop.f32.mrb[0].mxu0
      %1569 = vdwg.mxu0
      %v1570 = vadd.f32 %v1340, %v1492
      %v1571 = vadd.f32 %v1341, %v1497
      %v1572 = vadd.f32 %v1342, %v1502
      %v1573 = vadd.f32 %v1343, %v1507
      %v1574 = vadd.f32 %v1344, %v1512
      %v1575 = vadd.f32 %v1345, %v1517
      %v1576 = vadd.f32 %v1346, %v1522
      %v1577 = vadd.f32 %v1347, %v1527
      %v1578 = vadd.f32 %v1348, %v1532
      %v1579 = vadd.f32 %v1349, %v1537
      %v1580 = vadd.f32 %v1350, %v1542
      %v1581 = vadd.f32 %v1351, %v1547
      %v1582 = vadd.f32 %v1352, %v1552
      %v1583 = vadd.f32 %v1353, %v1557
      %v1584 = vadd.f32 %v1354, %v1562
      %v1585 = vadd.f32 %v1355, %v1567
      %v1586 = vld [vmem:[%s448 + $0x9] sm:$0xff]
      %v1587 = vld [vmem:[%s448 + $0x11] sm:$0xff]
      %v1588 = vld [vmem:[%s448 + $0x29] sm:$0xff]
      %v1589 = vld [vmem:[%s448 + $0x31] sm:$0xff]
      %v1590 = vld [vmem:[%s448 + $0x49] sm:$0xff]
      %v1591 = vld [vmem:[%s448 + $0x51] sm:$0xff]
      %v1592 = vld [vmem:[%s448 + $0x69] sm:$0xff]
      %v1593 = vld [vmem:[%s448 + $0x71] sm:$0xff]
      %v1594 = vld [vmem:[%s448 + $0x89] sm:$0xff]
      %v1595 = vld [vmem:[%s448 + $0x91] sm:$0xff]
      %v1596 = vld [vmem:[%s448 + $0xa9] sm:$0xff]
      %v1597 = vld [vmem:[%s448 + $0xb1] sm:$0xff]
      %v1598 = vld [vmem:[%s448 + $0xc9] sm:$0xff]
      %v1599 = vld [vmem:[%s448 + $0xd1] sm:$0xff]
      %v1600 = vld [vmem:[%s448 + $0xe9] sm:$0xff]
      %v1601 = vld [vmem:[%s448 + $0xf1] sm:$0xff]
      %s1602 = scalar_lea.vmem %s3, 20
      %v1603 = vld [vmem:[%s1602] sm:$0xf]
      %v1605 = vsel %vm409, %v1586, 0
      %v1608 = vsel %vm409, %v1587, 0
      %v1611 = vsel %vm409, %v1588, 0
      %v1614 = vsel %vm409, %v1589, 0
      %v1617 = vsel %vm409, %v1590, 0
      %v1620 = vsel %vm409, %v1591, 0
      %v1623 = vsel %vm409, %v1592, 0
      %v1626 = vsel %vm409, %v1593, 0
      %v1629 = vsel %vm409, %v1594, 0
      %v1632 = vsel %vm409, %v1595, 0
      %v1635 = vsel %vm409, %v1596, 0
      %v1638 = vsel %vm409, %v1597, 0
      %v1641 = vsel %vm409, %v1598, 0
      %v1644 = vsel %vm409, %v1599, 0
      %v1647 = vsel %vm409, %v1600, 0
      %v1650 = vsel %vm409, %v1601, 0
      %v1653 = vsel %vm551, %v1603, 0
      %1655 = vmatprep.subr.mxu0 0.0
      %1656 = vmatpush1.msra.mxu0 %v1653
      %1657 = vmatprep.subr.mxu0 0.0
      %1658 = vmatpush1.msra.mxu0 0.0
      %1659 = vmatprep.subr.mxu0 0.0
      %1660 = vmatpush1.msra.mxu0 0.0
      %1661 = vmatprep.subr.mxu0 0.0
      %1662 = vmatpush1.msra.mxu0 0.0
      %1663 = vmatprep.subr.mxu0 0.0
      %1664 = vmatpush1.msra.mxu0 0.0
      %1665 = vmatprep.subr.mxu0 0.0
      %1666 = vmatpush1.msra.mxu0 0.0
      %1667 = vmatprep.subr.mxu0 0.0
      %1668 = vmatpush1.msra.mxu0 0.0
      %1669 = vmatprep.subr.mxu0 0.0
      %1670 = vmatpush1.msra.mxu0 0.0
      %1671 = vmatprep.subr.mxu0 0.0
      %1672 = vmatpush1.msra.mxu0 0.0
      %1673 = vmatprep.subr.mxu0 0.0
      %1674 = vmatpush1.msra.mxu0 0.0
      %1675 = vmatprep.subr.mxu0 0.0
      %1676 = vmatpush1.msra.mxu0 0.0
      %1677 = vmatprep.subr.mxu0 0.0
      %1678 = vmatpush1.msra.mxu0 0.0
      %1679 = vmatprep.subr.mxu0 0.0
      %1680 = vmatpush1.msra.mxu0 0.0
      %1681 = vmatprep.subr.mxu0 0.0
      %1682 = vmatpush1.msra.mxu0 0.0
      %1683 = vmatprep.subr.mxu0 0.0
      %1684 = vmatpush1.msra.mxu0 0.0
      %1685 = vmatprep.subr.mxu0 0.0
      %1686 = vmatpush1.msra.mxu0 0.0
      %1687 = vmatprep.subr.mxu0 0.0
      %1688 = vmatpush1.msra.mxu0 0.0
      %1689 = vmatprep.subr.mxu0 0.0
      %1690 = vmatpush1.msra.mxu0 0.0
      %1691 = vmatprep.subr.mxu0 0.0
      %1692 = vmatpush1.msra.mxu0 0.0
      %1693 = vmatprep.subr.mxu0 0.0
      %1694 = vmatpush1.msra.mxu0 0.0
      %1695 = vmatprep.subr.mxu0 0.0
      %1696 = vmatpush1.msra.mxu0 0.0
      %1697 = vmatprep.subr.mxu0 0.0
      %1698 = vmatpush1.msra.mxu0 0.0
      %1699 = vmatprep.subr.mxu0 0.0
      %1700 = vmatpush1.msra.mxu0 0.0
      %1701 = vmatprep.subr.mxu0 0.0
      %1702 = vmatpush1.msra.mxu0 0.0
      %1703 = vmatprep.subr.mxu0 0.0
      %1704 = vmatpush1.msra.mxu0 0.0
      %1705 = vmatprep.subr.mxu0 0.0
      %1706 = vmatpush1.msra.mxu0 0.0
      %1707 = vmatprep.subr.mxu0 0.0
      %1708 = vmatpush1.msra.mxu0 0.0
      %1709 = vmatprep.subr.mxu0 0.0
      %1710 = vmatpush1.msra.mxu0 0.0
      %1711 = vmatprep.subr.mxu0 0.0
      %1712 = vmatpush1.msra.mxu0 0.0
      %1713 = vmatprep.subr.mxu0 0.0
      %1714 = vmatpush1.msra.mxu0 0.0
      %1715 = vmatprep.subr.mxu0 0.0
      %1716 = vmatpush1.msra.mxu0 0.0
      %1717 = vmatprep.subr.mxu0 0.0
      %1718 = vmatpush1.msra.mxu0 0.0
      %1719 = vmatprep.mubr.f32.mxu0 0.0
      %1720 = vmatmul.mubr.f32.gmra.mrb[0].mxu0 %v1605
      %v1721 = vpop.f32.mrb[0].mxu0
      %v1722 = vadd.f32 0.0, %v1721
      %v1723 = vpop.f32.mrb[0].mxu0
      %1724 = vmatprep.mubr.f32.mxu0 0.0
      %1725 = vmatmul.mubr.f32.gmra.mrb[0].mxu0 %v1608
      %v1726 = vpop.f32.mrb[0].mxu0
      %v1727 = vadd.f32 0.0, %v1726
      %v1728 = vpop.f32.mrb[0].mxu0
      %1729 = vmatprep.mubr.f32.mxu0 0.0
      %1730 = vmatmul.mubr.f32.gmra.mrb[0].mxu0 %v1611
      %v1731 = vpop.f32.mrb[0].mxu0
      %v1732 = vadd.f32 0.0, %v1731
      %v1733 = vpop.f32.mrb[0].mxu0
      %1734 = vmatprep.mubr.f32.mxu0 0.0
      %1735 = vmatmul.mubr.f32.gmra.mrb[0].mxu0 %v1614
      %v1736 = vpop.f32.mrb[0].mxu0
      %v1737 = vadd.f32 0.0, %v1736
      %v1738 = vpop.f32.mrb[0].mxu0
      %1739 = vmatprep.mubr.f32.mxu0 0.0
      %1740 = vmatmul.mubr.f32.gmra.mrb[0].mxu0 %v1617
      %v1741 = vpop.f32.mrb[0].mxu0
      %v1742 = vadd.f32 0.0, %v1741
      %v1743 = vpop.f32.mrb[0].mxu0
      %1744 = vmatprep.mubr.f32.mxu0 0.0
      %1745 = vmatmul.mubr.f32.gmra.mrb[0].mxu0 %v1620
      %v1746 = vpop.f32.mrb[0].mxu0
      %v1747 = vadd.f32 0.0, %v1746
      %v1748 = vpop.f32.mrb[0].mxu0
      %1749 = vmatprep.mubr.f32.mxu0 0.0
      %1750 = vmatmul.mubr.f32.gmra.mrb[0].mxu0 %v1623
      %v1751 = vpop.f32.mrb[0].mxu0
      %v1752 = vadd.f32 0.0, %v1751
      %v1753 = vpop.f32.mrb[0].mxu0
      %1754 = vmatprep.mubr.f32.mxu0 0.0
      %1755 = vmatmul.mubr.f32.gmra.mrb[0].mxu0 %v1626
      %v1756 = vpop.f32.mrb[0].mxu0
      %v1757 = vadd.f32 0.0, %v1756
      %v1758 = vpop.f32.mrb[0].mxu0
      %1759 = vmatprep.mubr.f32.mxu0 0.0
      %1760 = vmatmul.mubr.f32.gmra.mrb[0].mxu0 %v1629
      %v1761 = vpop.f32.mrb[0].mxu0
      %v1762 = vadd.f32 0.0, %v1761
      %v1763 = vpop.f32.mrb[0].mxu0
      %1764 = vmatprep.mubr.f32.mxu0 0.0
      %1765 = vmatmul.mubr.f32.gmra.mrb[0].mxu0 %v1632
      %v1766 = vpop.f32.mrb[0].mxu0
      %v1767 = vadd.f32 0.0, %v1766
      %v1768 = vpop.f32.mrb[0].mxu0
      %1769 = vmatprep.mubr.f32.mxu0 0.0
      %1770 = vmatmul.mubr.f32.gmra.mrb[0].mxu0 %v1635
      %v1771 = vpop.f32.mrb[0].mxu0
      %v1772 = vadd.f32 0.0, %v1771
      %v1773 = vpop.f32.mrb[0].mxu0
      %1774 = vmatprep.mubr.f32.mxu0 0.0
      %1775 = vmatmul.mubr.f32.gmra.mrb[0].mxu0 %v1638
      %v1776 = vpop.f32.mrb[0].mxu0
      %v1777 = vadd.f32 0.0, %v1776
      %v1778 = vpop.f32.mrb[0].mxu0
      %1779 = vmatprep.mubr.f32.mxu0 0.0
      %1780 = vmatmul.mubr.f32.gmra.mrb[0].mxu0 %v1641
      %v1781 = vpop.f32.mrb[0].mxu0
      %v1782 = vadd.f32 0.0, %v1781
      %v1783 = vpop.f32.mrb[0].mxu0
      %1784 = vmatprep.mubr.f32.mxu0 0.0
      %1785 = vmatmul.mubr.f32.gmra.mrb[0].mxu0 %v1644
      %v1786 = vpop.f32.mrb[0].mxu0
      %v1787 = vadd.f32 0.0, %v1786
      %v1788 = vpop.f32.mrb[0].mxu0
      %1789 = vmatprep.mubr.f32.mxu0 0.0
      %1790 = vmatmul.mubr.f32.gmra.mrb[0].mxu0 %v1647
      %v1791 = vpop.f32.mrb[0].mxu0
      %v1792 = vadd.f32 0.0, %v1791
      %v1793 = vpop.f32.mrb[0].mxu0
      %1794 = vmatprep.mubr.f32.mxu0 0.0
      %1795 = vmatmul.mubr.f32.gmra.mrb[0].mxu0 %v1650
      %v1796 = vpop.f32.mrb[0].mxu0
      %v1797 = vadd.f32 0.0, %v1796
      %v1798 = vpop.f32.mrb[0].mxu0
      %1799 = vdwg.mxu0
      %v1800 = vadd.f32 %v1570, %v1722
      %v1801 = vadd.f32 %v1571, %v1727
      %v1802 = vadd.f32 %v1572, %v1732
      %v1803 = vadd.f32 %v1573, %v1737
      %v1804 = vadd.f32 %v1574, %v1742
      %v1805 = vadd.f32 %v1575, %v1747
      %v1806 = vadd.f32 %v1576, %v1752
      %v1807 = vadd.f32 %v1577, %v1757
      %v1808 = vadd.f32 %v1578, %v1762
      %v1809 = vadd.f32 %v1579, %v1767
      %v1810 = vadd.f32 %v1580, %v1772
      %v1811 = vadd.f32 %v1581, %v1777
      %v1812 = vadd.f32 %v1582, %v1782
      %v1813 = vadd.f32 %v1583, %v1787
      %v1814 = vadd.f32 %v1584, %v1792
      %v1815 = vadd.f32 %v1585, %v1797
      %s1816 = scalar_lea.vmem [#allocation2], 64
      %v1817 = vld [vmem:[%s1816 + $0x7] sm:$0xff]
      %v1818 = vld [vmem:[%s1816 + $0xf] sm:$0xff]
      %v1819 = vld [vmem:[%s1816 + $0x27] sm:$0xff]
      %v1820 = vld [vmem:[%s1816 + $0x2f] sm:$0xff]
      %v1821 = vld [vmem:[%s1816 + $0x47] sm:$0xff]
      %v1822 = vld [vmem:[%s1816 + $0x4f] sm:$0xff]
      %v1823 = vld [vmem:[%s1816 + $0x67] sm:$0xff]
      %v1824 = vld [vmem:[%s1816 + $0x6f] sm:$0xff]
      %v1825 = vld [vmem:[%s1816 + $0x87] sm:$0xff]
      %v1826 = vld [vmem:[%s1816 + $0x8f] sm:$0xff]
      %v1827 = vld [vmem:[%s1816 + $0xa7] sm:$0xff]
      %v1828 = vld [vmem:[%s1816 + $0xaf] sm:$0xff]
      %v1829 = vld [vmem:[%s1816 + $0xc7] sm:$0xff]
      %v1830 = vld [vmem:[%s1816 + $0xcf] sm:$0xff]
      %v1831 = vld [vmem:[%s1816 + $0xe7] sm:$0xff]
      %v1832 = vld [vmem:[%s1816 + $0xef] sm:$0xff]
      %s1833 = scalar_lea.vmem %s3, 24
      %v1834 = vld [vmem:[%s1833] sm:$0xf]
      %v1836 = vsel %vm409, %v1817, 0
      %v1839 = vsel %vm409, %v1818, 0
      %v1842 = vsel %vm409, %v1819, 0
      %v1845 = vsel %vm409, %v1820, 0
      %v1848 = vsel %vm409, %v1821, 0
      %v1851 = vsel %vm409, %v1822, 0
      %v1854 = vsel %vm409, %v1823, 0
      %v1857 = vsel %vm409, %v1824, 0
      %v1860 = vsel %vm409, %v1825, 0
      %v1863 = vsel %vm409, %v1826, 0
      %v1866 = vsel %vm409, %v1827, 0
      %v1869 = vsel %vm409, %v1828, 0
      %v1872 = vsel %vm409, %v1829, 0
      %v1875 = vsel %vm409, %v1830, 0
      %v1878 = vsel %vm409, %v1831, 0
      %v1881 = vsel %vm409, %v1832, 0
      %v1884 = vsel %vm551, %v1834, 0
      %1886 = vmatprep.subr.mxu0 0.0
      %1887 = vmatpush1.msra.mxu0 %v1884
      %1888 = vmatprep.subr.mxu0 0.0
      %1889 = vmatpush1.msra.mxu0 0.0
      %1890 = vmatprep.subr.mxu0 0.0
      %1891 = vmatpush1.msra.mxu0 0.0
      %1892 = vmatprep.subr.mxu0 0.0
      %1893 = vmatpush1.msra.mxu0 0.0
      %1894 = vmatprep.subr.mxu0 0.0
      %1895 = vmatpush1.msra.mxu0 0.0
      %1896 = vmatprep.subr.mxu0 0.0
      %1897 = vmatpush1.msra.mxu0 0.0
      %1898 = vmatprep.subr.mxu0 0.0
      %1899 = vmatpush1.msra.mxu0 0.0
      %1900 = vmatprep.subr.mxu0 0.0
      %1901 = vmatpush1.msra.mxu0 0.0
      %1902 = vmatprep.subr.mxu0 0.0
      %1903 = vmatpush1.msra.mxu0 0.0
      %1904 = vmatprep.subr.mxu0 0.0
      %1905 = vmatpush1.msra.mxu0 0.0
      %1906 = vmatprep.subr.mxu0 0.0
      %1907 = vmatpush1.msra.mxu0 0.0
      %1908 = vmatprep.subr.mxu0 0.0
      %1909 = vmatpush1.msra.mxu0 0.0
      %1910 = vmatprep.subr.mxu0 0.0
      %1911 = vmatpush1.msra.mxu0 0.0
      %1912 = vmatprep.subr.mxu0 0.0
      %1913 = vmatpush1.msra.mxu0 0.0
      %1914 = vmatprep.subr.mxu0 0.0
      %1915 = vmatpush1.msra.mxu0 0.0
      %1916 = vmatprep.subr.mxu0 0.0
      %1917 = vmatpush1.msra.mxu0 0.0
      %1918 = vmatprep.subr.mxu0 0.0
      %1919 = vmatpush1.msra.mxu0 0.0
      %1920 = vmatprep.subr.mxu0 0.0
      %1921 = vmatpush1.msra.mxu0 0.0
      %1922 = vmatprep.subr.mxu0 0.0
      %1923 = vmatpush1.msra.mxu0 0.0
      %1924 = vmatprep.subr.mxu0 0.0
      %1925 = vmatpush1.msra.mxu0 0.0
      %1926 = vmatprep.subr.mxu0 0.0
      %1927 = vmatpush1.msra.mxu0 0.0
      %1928 = vmatprep.subr.mxu0 0.0
      %1929 = vmatpush1.msra.mxu0 0.0
      %1930 = vmatprep.subr.mxu0 0.0
      %1931 = vmatpush1.msra.mxu0 0.0
      %1932 = vmatprep.subr.mxu0 0.0
      %1933 = vmatpush1.msra.mxu0 0.0
      %1934 = vmatprep.subr.mxu0 0.0
      %1935 = vmatpush1.msra.mxu0 0.0
      %1936 = vmatprep.subr.mxu0 0.0
      %1937 = vmatpush1.msra.mxu0 0.0
      %1938 = vmatprep.subr.mxu0 0.0
      %1939 = vmatpush1.msra.mxu0 0.0
      %1940 = vmatprep.subr.mxu0 0.0
      %1941 = vmatpush1.msra.mxu0 0.0
      %1942 = vmatprep.subr.mxu0 0.0
      %1943 = vmatpush1.msra.mxu0 0.0
      %1944 = vmatprep.subr.mxu0 0.0
      %1945 = vmatpush1.msra.mxu0 0.0
      %1946 = vmatprep.subr.mxu0 0.0
      %1947 = vmatpush1.msra.mxu0 0.0
      %1948 = vmatprep.subr.mxu0 0.0
      %1949 = vmatpush1.msra.mxu0 0.0
      %1950 = vmatprep.mubr.f32.mxu0 0.0
      %1951 = vmatmul.mubr.f32.gmra.mrb[0].mxu0 %v1836
      %v1952 = vpop.f32.mrb[0].mxu0
      %v1953 = vadd.f32 0.0, %v1952
      %v1954 = vpop.f32.mrb[0].mxu0
      %1955 = vmatprep.mubr.f32.mxu0 0.0
      %1956 = vmatmul.mubr.f32.gmra.mrb[0].mxu0 %v1839
      %v1957 = vpop.f32.mrb[0].mxu0
      %v1958 = vadd.f32 0.0, %v1957
      %v1959 = vpop.f32.mrb[0].mxu0
      %1960 = vmatprep.mubr.f32.mxu0 0.0
      %1961 = vmatmul.mubr.f32.gmra.mrb[0].mxu0 %v1842
      %v1962 = vpop.f32.mrb[0].mxu0
      %v1963 = vadd.f32 0.0, %v1962
      %v1964 = vpop.f32.mrb[0].mxu0
      %1965 = vmatprep.mubr.f32.mxu0 0.0
      %1966 = vmatmul.mubr.f32.gmra.mrb[0].mxu0 %v1845
      %v1967 = vpop.f32.mrb[0].mxu0
      %v1968 = vadd.f32 0.0, %v1967
      %v1969 = vpop.f32.mrb[0].mxu0
      %1970 = vmatprep.mubr.f32.mxu0 0.0
      %1971 = vmatmul.mubr.f32.gmra.mrb[0].mxu0 %v1848
      %v1972 = vpop.f32.mrb[0].mxu0
      %v1973 = vadd.f32 0.0, %v1972
      %v1974 = vpop.f32.mrb[0].mxu0
      %1975 = vmatprep.mubr.f32.mxu0 0.0
      %1976 = vmatmul.mubr.f32.gmra.mrb[0].mxu0 %v1851
      %v1977 = vpop.f32.mrb[0].mxu0
      %v1978 = vadd.f32 0.0, %v1977
      %v1979 = vpop.f32.mrb[0].mxu0
      %1980 = vmatprep.mubr.f32.mxu0 0.0
      %1981 = vmatmul.mubr.f32.gmra.mrb[0].mxu0 %v1854
      %v1982 = vpop.f32.mrb[0].mxu0
      %v1983 = vadd.f32 0.0, %v1982
      %v1984 = vpop.f32.mrb[0].mxu0
      %1985 = vmatprep.mubr.f32.mxu0 0.0
      %1986 = vmatmul.mubr.f32.gmra.mrb[0].mxu0 %v1857
      %v1987 = vpop.f32.mrb[0].mxu0
      %v1988 = vadd.f32 0.0, %v1987
      %v1989 = vpop.f32.mrb[0].mxu0
      %1990 = vmatprep.mubr.f32.mxu0 0.0
      %1991 = vmatmul.mubr.f32.gmra.mrb[0].mxu0 %v1860
      %v1992 = vpop.f32.mrb[0].mxu0
      %v1993 = vadd.f32 0.0, %v1992
      %v1994 = vpop.f32.mrb[0].mxu0
      %1995 = vmatprep.mubr.f32.mxu0 0.0
      %1996 = vmatmul.mubr.f32.gmra.mrb[0].mxu0 %v1863
      %v1997 = vpop.f32.mrb[0].mxu0
      %v1998 = vadd.f32 0.0, %v1997
      %v1999 = vpop.f32.mrb[0].mxu0
      %2000 = vmatprep.mubr.f32.mxu0 0.0
      %2001 = vmatmul.mubr.f32.gmra.mrb[0].mxu0 %v1866
      %v2002 = vpop.f32.mrb[0].mxu0
      %v2003 = vadd.f32 0.0, %v2002
      %v2004 = vpop.f32.mrb[0].mxu0
      %2005 = vmatprep.mubr.f32.mxu0 0.0
      %2006 = vmatmul.mubr.f32.gmra.mrb[0].mxu0 %v1869
      %v2007 = vpop.f32.mrb[0].mxu0
      %v2008 = vadd.f32 0.0, %v2007
      %v2009 = vpop.f32.mrb[0].mxu0
      %2010 = vmatprep.mubr.f32.mxu0 0.0
      %2011 = vmatmul.mubr.f32.gmra.mrb[0].mxu0 %v1872
      %v2012 = vpop.f32.mrb[0].mxu0
      %v2013 = vadd.f32 0.0, %v2012
      %v2014 = vpop.f32.mrb[0].mxu0
      %2015 = vmatprep.mubr.f32.mxu0 0.0
      %2016 = vmatmul.mubr.f32.gmra.mrb[0].mxu0 %v1875
      %v2017 = vpop.f32.mrb[0].mxu0
      %v2018 = vadd.f32 0.0, %v2017
      %v2019 = vpop.f32.mrb[0].mxu0
      %2020 = vmatprep.mubr.f32.mxu0 0.0
      %2021 = vmatmul.mubr.f32.gmra.mrb[0].mxu0 %v1878
      %v2022 = vpop.f32.mrb[0].mxu0
      %v2023 = vadd.f32 0.0, %v2022
      %v2024 = vpop.f32.mrb[0].mxu0
      %2025 = vmatprep.mubr.f32.mxu0 0.0
      %2026 = vmatmul.mubr.f32.gmra.mrb[0].mxu0 %v1881
      %v2027 = vpop.f32.mrb[0].mxu0
      %v2028 = vadd.f32 0.0, %v2027
      %v2029 = vpop.f32.mrb[0].mxu0
      %2030 = vdwg.mxu0
      %v2031 = vadd.f32 %v1800, %v1953
      %v2032 = vadd.f32 %v1801, %v1958
      %v2033 = vadd.f32 %v1802, %v1963
      %v2034 = vadd.f32 %v1803, %v1968
      %v2035 = vadd.f32 %v1804, %v1973
      %v2036 = vadd.f32 %v1805, %v1978
      %v2037 = vadd.f32 %v1806, %v1983
      %v2038 = vadd.f32 %v1807, %v1988
      %v2039 = vadd.f32 %v1808, %v1993
      %v2040 = vadd.f32 %v1809, %v1998
      %v2041 = vadd.f32 %v1810, %v2003
      %v2042 = vadd.f32 %v1811, %v2008
      %v2043 = vadd.f32 %v1812, %v2013
      %v2044 = vadd.f32 %v1813, %v2018
      %v2045 = vadd.f32 %v1814, %v2023
      %v2046 = vadd.f32 %v1815, %v2028
      %v2047 = vld [vmem:[%s1816 + $0x8] sm:$0xff]
      %v2048 = vld [vmem:[%s1816 + $0x10] sm:$0xff]
      %v2049 = vld [vmem:[%s1816 + $0x28] sm:$0xff]
      %v2050 = vld [vmem:[%s1816 + $0x30] sm:$0xff]
      %v2051 = vld [vmem:[%s1816 + $0x48] sm:$0xff]
      %v2052 = vld [vmem:[%s1816 + $0x50] sm:$0xff]
      %v2053 = vld [vmem:[%s1816 + $0x68] sm:$0xff]
      %v2054 = vld [vmem:[%s1816 + $0x70] sm:$0xff]
      %v2055 = vld [vmem:[%s1816 + $0x88] sm:$0xff]
      %v2056 = vld [vmem:[%s1816 + $0x90] sm:$0xff]
      %v2057 = vld [vmem:[%s1816 + $0xa8] sm:$0xff]
      %v2058 = vld [vmem:[%s1816 + $0xb0] sm:$0xff]
      %v2059 = vld [vmem:[%s1816 + $0xc8] sm:$0xff]
      %v2060 = vld [vmem:[%s1816 + $0xd0] sm:$0xff]
      %v2061 = vld [vmem:[%s1816 + $0xe8] sm:$0xff]
      %v2062 = vld [vmem:[%s1816 + $0xf0] sm:$0xff]
      %s2063 = scalar_lea.vmem %s3, 28
      %v2064 = vld [vmem:[%s2063] sm:$0xf]
      %v2066 = vsel %vm409, %v2047, 0
      %v2069 = vsel %vm409, %v2048, 0
      %v2072 = vsel %vm409, %v2049, 0
      %v2075 = vsel %vm409, %v2050, 0
      %v2078 = vsel %vm409, %v2051, 0
      %v2081 = vsel %vm409, %v2052, 0
      %v2084 = vsel %vm409, %v2053, 0
      %v2087 = vsel %vm409, %v2054, 0
      %v2090 = vsel %vm409, %v2055, 0
      %v2093 = vsel %vm409, %v2056, 0
      %v2096 = vsel %vm409, %v2057, 0
      %v2099 = vsel %vm409, %v2058, 0
      %v2102 = vsel %vm409, %v2059, 0
      %v2105 = vsel %vm409, %v2060, 0
      %v2108 = vsel %vm409, %v2061, 0
      %v2111 = vsel %vm409, %v2062, 0
      %v2114 = vsel %vm551, %v2064, 0
      %2116 = vmatprep.subr.mxu0 0.0
      %2117 = vmatpush1.msra.mxu0 %v2114
      %2118 = vmatprep.subr.mxu0 0.0
      %2119 = vmatpush1.msra.mxu0 0.0
      %2120 = vmatprep.subr.mxu0 0.0
      %2121 = vmatpush1.msra.mxu0 0.0
      %2122 = vmatprep.subr.mxu0 0.0
      %2123 = vmatpush1.msra.mxu0 0.0
      %2124 = vmatprep.subr.mxu0 0.0
      %2125 = vmatpush1.msra.mxu0 0.0
      %2126 = vmatprep.subr.mxu0 0.0
      %2127 = vmatpush1.msra.mxu0 0.0
      %2128 = vmatprep.subr.mxu0 0.0
      %2129 = vmatpush1.msra.mxu0 0.0
      %2130 = vmatprep.subr.mxu0 0.0
      %2131 = vmatpush1.msra.mxu0 0.0
      %2132 = vmatprep.subr.mxu0 0.0
      %2133 = vmatpush1.msra.mxu0 0.0
      %2134 = vmatprep.subr.mxu0 0.0
      %2135 = vmatpush1.msra.mxu0 0.0
      %2136 = vmatprep.subr.mxu0 0.0
      %2137 = vmatpush1.msra.mxu0 0.0
      %2138 = vmatprep.subr.mxu0 0.0
      %2139 = vmatpush1.msra.mxu0 0.0
      %2140 = vmatprep.subr.mxu0 0.0
      %2141 = vmatpush1.msra.mxu0 0.0
      %2142 = vmatprep.subr.mxu0 0.0
      %2143 = vmatpush1.msra.mxu0 0.0
      %2144 = vmatprep.subr.mxu0 0.0
      %2145 = vmatpush1.msra.mxu0 0.0
      %2146 = vmatprep.subr.mxu0 0.0
      %2147 = vmatpush1.msra.mxu0 0.0
      %2148 = vmatprep.subr.mxu0 0.0
      %2149 = vmatpush1.msra.mxu0 0.0
      %2150 = vmatprep.subr.mxu0 0.0
      %2151 = vmatpush1.msra.mxu0 0.0
      %2152 = vmatprep.subr.mxu0 0.0
      %2153 = vmatpush1.msra.mxu0 0.0
      %2154 = vmatprep.subr.mxu0 0.0
      %2155 = vmatpush1.msra.mxu0 0.0
      %2156 = vmatprep.subr.mxu0 0.0
      %2157 = vmatpush1.msra.mxu0 0.0
      %2158 = vmatprep.subr.mxu0 0.0
      %2159 = vmatpush1.msra.mxu0 0.0
      %2160 = vmatprep.subr.mxu0 0.0
      %2161 = vmatpush1.msra.mxu0 0.0
      %2162 = vmatprep.subr.mxu0 0.0
      %2163 = vmatpush1.msra.mxu0 0.0
      %2164 = vmatprep.subr.mxu0 0.0
      %2165 = vmatpush1.msra.mxu0 0.0
      %2166 = vmatprep.subr.mxu0 0.0
      %2167 = vmatpush1.msra.mxu0 0.0
      %2168 = vmatprep.subr.mxu0 0.0
      %2169 = vmatpush1.msra.mxu0 0.0
      %2170 = vmatprep.subr.mxu0 0.0
      %2171 = vmatpush1.msra.mxu0 0.0
      %2172 = vmatprep.subr.mxu0 0.0
      %2173 = vmatpush1.msra.mxu0 0.0
      %2174 = vmatprep.subr.mxu0 0.0
      %2175 = vmatpush1.msra.mxu0 0.0
      %2176 = vmatprep.subr.mxu0 0.0
      %2177 = vmatpush1.msra.mxu0 0.0
      %2178 = vmatprep.subr.mxu0 0.0
      %2179 = vmatpush1.msra.mxu0 0.0
      %2180 = vmatprep.mubr.f32.mxu0 0.0
      %2181 = vmatmul.mubr.f32.gmra.mrb[0].mxu0 %v2066
      %v2182 = vpop.f32.mrb[0].mxu0
      %v2183 = vadd.f32 0.0, %v2182
      %v2184 = vpop.f32.mrb[0].mxu0
      %2185 = vmatprep.mubr.f32.mxu0 0.0
      %2186 = vmatmul.mubr.f32.gmra.mrb[0].mxu0 %v2069
      %v2187 = vpop.f32.mrb[0].mxu0
      %v2188 = vadd.f32 0.0, %v2187
      %v2189 = vpop.f32.mrb[0].mxu0
      %2190 = vmatprep.mubr.f32.mxu0 0.0
      %2191 = vmatmul.mubr.f32.gmra.mrb[0].mxu0 %v2072
      %v2192 = vpop.f32.mrb[0].mxu0
      %v2193 = vadd.f32 0.0, %v2192
      %v2194 = vpop.f32.mrb[0].mxu0
      %2195 = vmatprep.mubr.f32.mxu0 0.0
      %2196 = vmatmul.mubr.f32.gmra.mrb[0].mxu0 %v2075
      %v2197 = vpop.f32.mrb[0].mxu0
      %v2198 = vadd.f32 0.0, %v2197
      %v2199 = vpop.f32.mrb[0].mxu0
      %2200 = vmatprep.mubr.f32.mxu0 0.0
      %2201 = vmatmul.mubr.f32.gmra.mrb[0].mxu0 %v2078
      %v2202 = vpop.f32.mrb[0].mxu0
      %v2203 = vadd.f32 0.0, %v2202
      %v2204 = vpop.f32.mrb[0].mxu0
      %2205 = vmatprep.mubr.f32.mxu0 0.0
      %2206 = vmatmul.mubr.f32.gmra.mrb[0].mxu0 %v2081
      %v2207 = vpop.f32.mrb[0].mxu0
      %v2208 = vadd.f32 0.0, %v2207
      %v2209 = vpop.f32.mrb[0].mxu0
      %2210 = vmatprep.mubr.f32.mxu0 0.0
      %2211 = vmatmul.mubr.f32.gmra.mrb[0].mxu0 %v2084
      %v2212 = vpop.f32.mrb[0].mxu0
      %v2213 = vadd.f32 0.0, %v2212
      %v2214 = vpop.f32.mrb[0].mxu0
      %2215 = vmatprep.mubr.f32.mxu0 0.0
      %2216 = vmatmul.mubr.f32.gmra.mrb[0].mxu0 %v2087
      %v2217 = vpop.f32.mrb[0].mxu0
      %v2218 = vadd.f32 0.0, %v2217
      %v2219 = vpop.f32.mrb[0].mxu0
      %2220 = vmatprep.mubr.f32.mxu0 0.0
      %2221 = vmatmul.mubr.f32.gmra.mrb[0].mxu0 %v2090
      %v2222 = vpop.f32.mrb[0].mxu0
      %v2223 = vadd.f32 0.0, %v2222
      %v2224 = vpop.f32.mrb[0].mxu0
      %2225 = vmatprep.mubr.f32.mxu0 0.0
      %2226 = vmatmul.mubr.f32.gmra.mrb[0].mxu0 %v2093
      %v2227 = vpop.f32.mrb[0].mxu0
      %v2228 = vadd.f32 0.0, %v2227
      %v2229 = vpop.f32.mrb[0].mxu0
      %2230 = vmatprep.mubr.f32.mxu0 0.0
      %2231 = vmatmul.mubr.f32.gmra.mrb[0].mxu0 %v2096
      %v2232 = vpop.f32.mrb[0].mxu0
      %v2233 = vadd.f32 0.0, %v2232
      %v2234 = vpop.f32.mrb[0].mxu0
      %2235 = vmatprep.mubr.f32.mxu0 0.0
      %2236 = vmatmul.mubr.f32.gmra.mrb[0].mxu0 %v2099
      %v2237 = vpop.f32.mrb[0].mxu0
      %v2238 = vadd.f32 0.0, %v2237
      %v2239 = vpop.f32.mrb[0].mxu0
      %2240 = vmatprep.mubr.f32.mxu0 0.0
      %2241 = vmatmul.mubr.f32.gmra.mrb[0].mxu0 %v2102
      %v2242 = vpop.f32.mrb[0].mxu0
      %v2243 = vadd.f32 0.0, %v2242
      %v2244 = vpop.f32.mrb[0].mxu0
      %2245 = vmatprep.mubr.f32.mxu0 0.0
      %2246 = vmatmul.mubr.f32.gmra.mrb[0].mxu0 %v2105
      %v2247 = vpop.f32.mrb[0].mxu0
      %v2248 = vadd.f32 0.0, %v2247
      %v2249 = vpop.f32.mrb[0].mxu0
      %2250 = vmatprep.mubr.f32.mxu0 0.0
      %2251 = vmatmul.mubr.f32.gmra.mrb[0].mxu0 %v2108
      %v2252 = vpop.f32.mrb[0].mxu0
      %v2253 = vadd.f32 0.0, %v2252
      %v2254 = vpop.f32.mrb[0].mxu0
      %2255 = vmatprep.mubr.f32.mxu0 0.0
      %2256 = vmatmul.mubr.f32.gmra.mrb[0].mxu0 %v2111
      %v2257 = vpop.f32.mrb[0].mxu0
      %v2258 = vadd.f32 0.0, %v2257
      %v2259 = vpop.f32.mrb[0].mxu0
      %2260 = vdwg.mxu0
      %v2261 = vadd.f32 %v2031, %v2183
      %v2262 = vadd.f32 %v2032, %v2188
      %v2263 = vadd.f32 %v2033, %v2193
      %v2264 = vadd.f32 %v2034, %v2198
      %v2265 = vadd.f32 %v2035, %v2203
      %v2266 = vadd.f32 %v2036, %v2208
      %v2267 = vadd.f32 %v2037, %v2213
      %v2268 = vadd.f32 %v2038, %v2218
      %v2269 = vadd.f32 %v2039, %v2223
      %v2270 = vadd.f32 %v2040, %v2228
      %v2271 = vadd.f32 %v2041, %v2233
      %v2272 = vadd.f32 %v2042, %v2238
      %v2273 = vadd.f32 %v2043, %v2243
      %v2274 = vadd.f32 %v2044, %v2248
      %v2275 = vadd.f32 %v2045, %v2253
      %v2276 = vadd.f32 %v2046, %v2258
      %v2277 = vld [vmem:[%s1816 + $0x9] sm:$0xff]
      %v2278 = vld [vmem:[%s1816 + $0x11] sm:$0xff]
      %v2279 = vld [vmem:[%s1816 + $0x29] sm:$0xff]
      %v2280 = vld [vmem:[%s1816 + $0x31] sm:$0xff]
      %v2281 = vld [vmem:[%s1816 + $0x49] sm:$0xff]
      %v2282 = vld [vmem:[%s1816 + $0x51] sm:$0xff]
      %v2283 = vld [vmem:[%s1816 + $0x69] sm:$0xff]
      %v2284 = vld [vmem:[%s1816 + $0x71] sm:$0xff]
      %v2285 = vld [vmem:[%s1816 + $0x89] sm:$0xff]
      %v2286 = vld [vmem:[%s1816 + $0x91] sm:$0xff]
      %v2287 = vld [vmem:[%s1816 + $0xa9] sm:$0xff]
      %v2288 = vld [vmem:[%s1816 + $0xb1] sm:$0xff]
      %v2289 = vld [vmem:[%s1816 + $0xc9] sm:$0xff]
      %v2290 = vld [vmem:[%s1816 + $0xd1] sm:$0xff]
      %v2291 = vld [vmem:[%s1816 + $0xe9] sm:$0xff]
      %v2292 = vld [vmem:[%s1816 + $0xf1] sm:$0xff]
      %s2293 = scalar_lea.vmem %s3, 32
      %v2294 = vld [vmem:[%s2293] sm:$0xf]
      %v2296 = vsel %vm409, %v2277, 0
      %v2299 = vsel %vm409, %v2278, 0
      %v2302 = vsel %vm409, %v2279, 0
      %v2305 = vsel %vm409, %v2280, 0
      %v2308 = vsel %vm409, %v2281, 0
      %v2311 = vsel %vm409, %v2282, 0
      %v2314 = vsel %vm409, %v2283, 0
      %v2317 = vsel %vm409, %v2284, 0
      %v2320 = vsel %vm409, %v2285, 0
      %v2323 = vsel %vm409, %v2286, 0
      %v2326 = vsel %vm409, %v2287, 0
      %v2329 = vsel %vm409, %v2288, 0
      %v2332 = vsel %vm409, %v2289, 0
      %v2335 = vsel %vm409, %v2290, 0
      %v2338 = vsel %vm409, %v2291, 0
      %v2341 = vsel %vm409, %v2292, 0
      %v2344 = vsel %vm551, %v2294, 0
      %2346 = vmatprep.subr.mxu0 0.0
      %2347 = vmatpush1.msra.mxu0 %v2344
      %2348 = vmatprep.subr.mxu0 0.0
      %2349 = vmatpush1.msra.mxu0 0.0
      %2350 = vmatprep.subr.mxu0 0.0
      %2351 = vmatpush1.msra.mxu0 0.0
      %2352 = vmatprep.subr.mxu0 0.0
      %2353 = vmatpush1.msra.mxu0 0.0
      %2354 = vmatprep.subr.mxu0 0.0
      %2355 = vmatpush1.msra.mxu0 0.0
      %2356 = vmatprep.subr.mxu0 0.0
      %2357 = vmatpush1.msra.mxu0 0.0
      %2358 = vmatprep.subr.mxu0 0.0
      %2359 = vmatpush1.msra.mxu0 0.0
      %2360 = vmatprep.subr.mxu0 0.0
      %2361 = vmatpush1.msra.mxu0 0.0
      %2362 = vmatprep.subr.mxu0 0.0
      %2363 = vmatpush1.msra.mxu0 0.0
      %2364 = vmatprep.subr.mxu0 0.0
      %2365 = vmatpush1.msra.mxu0 0.0
      %2366 = vmatprep.subr.mxu0 0.0
      %2367 = vmatpush1.msra.mxu0 0.0
      %2368 = vmatprep.subr.mxu0 0.0
      %2369 = vmatpush1.msra.mxu0 0.0
      %2370 = vmatprep.subr.mxu0 0.0
      %2371 = vmatpush1.msra.mxu0 0.0
      %2372 = vmatprep.subr.mxu0 0.0
      %2373 = vmatpush1.msra.mxu0 0.0
      %2374 = vmatprep.subr.mxu0 0.0
      %2375 = vmatpush1.msra.mxu0 0.0
      %2376 = vmatprep.subr.mxu0 0.0
      %2377 = vmatpush1.msra.mxu0 0.0
      %2378 = vmatprep.subr.mxu0 0.0
      %2379 = vmatpush1.msra.mxu0 0.0
      %2380 = vmatprep.subr.mxu0 0.0
      %2381 = vmatpush1.msra.mxu0 0.0
      %2382 = vmatprep.subr.mxu0 0.0
      %2383 = vmatpush1.msra.mxu0 0.0
      %2384 = vmatprep.subr.mxu0 0.0
      %2385 = vmatpush1.msra.mxu0 0.0
      %2386 = vmatprep.subr.mxu0 0.0
      %2387 = vmatpush1.msra.mxu0 0.0
      %2388 = vmatprep.subr.mxu0 0.0
      %2389 = vmatpush1.msra.mxu0 0.0
      %2390 = vmatprep.subr.mxu0 0.0
      %2391 = vmatpush1.msra.mxu0 0.0
      %2392 = vmatprep.subr.mxu0 0.0
      %2393 = vmatpush1.msra.mxu0 0.0
      %2394 = vmatprep.subr.mxu0 0.0
      %2395 = vmatpush1.msra.mxu0 0.0
      %2396 = vmatprep.subr.mxu0 0.0
      %2397 = vmatpush1.msra.mxu0 0.0
      %2398 = vmatprep.subr.mxu0 0.0
      %2399 = vmatpush1.msra.mxu0 0.0
      %2400 = vmatprep.subr.mxu0 0.0
      %2401 = vmatpush1.msra.mxu0 0.0
      %2402 = vmatprep.subr.mxu0 0.0
      %2403 = vmatpush1.msra.mxu0 0.0
      %2404 = vmatprep.subr.mxu0 0.0
      %2405 = vmatpush1.msra.mxu0 0.0
      %2406 = vmatprep.subr.mxu0 0.0
      %2407 = vmatpush1.msra.mxu0 0.0
      %2408 = vmatprep.subr.mxu0 0.0
      %2409 = vmatpush1.msra.mxu0 0.0
      %2410 = vmatprep.mubr.f32.mxu0 0.0
      %2411 = vmatmul.mubr.f32.gmra.mrb[0].mxu0 %v2296
      %v2412 = vpop.f32.mrb[0].mxu0
      %v2413 = vadd.f32 0.0, %v2412
      %v2414 = vpop.f32.mrb[0].mxu0
      %2415 = vmatprep.mubr.f32.mxu0 0.0
      %2416 = vmatmul.mubr.f32.gmra.mrb[0].mxu0 %v2299
      %v2417 = vpop.f32.mrb[0].mxu0
      %v2418 = vadd.f32 0.0, %v2417
      %v2419 = vpop.f32.mrb[0].mxu0
      %2420 = vmatprep.mubr.f32.mxu0 0.0
      %2421 = vmatmul.mubr.f32.gmra.mrb[0].mxu0 %v2302
      %v2422 = vpop.f32.mrb[0].mxu0
      %v2423 = vadd.f32 0.0, %v2422
      %v2424 = vpop.f32.mrb[0].mxu0
      %2425 = vmatprep.mubr.f32.mxu0 0.0
      %2426 = vmatmul.mubr.f32.gmra.mrb[0].mxu0 %v2305
      %v2427 = vpop.f32.mrb[0].mxu0
      %v2428 = vadd.f32 0.0, %v2427
      %v2429 = vpop.f32.mrb[0].mxu0
      %2430 = vmatprep.mubr.f32.mxu0 0.0
      %2431 = vmatmul.mubr.f32.gmra.mrb[0].mxu0 %v2308
      %v2432 = vpop.f32.mrb[0].mxu0
      %v2433 = vadd.f32 0.0, %v2432
      %v2434 = vpop.f32.mrb[0].mxu0
      %2435 = vmatprep.mubr.f32.mxu0 0.0
      %2436 = vmatmul.mubr.f32.gmra.mrb[0].mxu0 %v2311
      %v2437 = vpop.f32.mrb[0].mxu0
      %v2438 = vadd.f32 0.0, %v2437
      %v2439 = vpop.f32.mrb[0].mxu0
      %2440 = vmatprep.mubr.f32.mxu0 0.0
      %2441 = vmatmul.mubr.f32.gmra.mrb[0].mxu0 %v2314
      %v2442 = vpop.f32.mrb[0].mxu0
      %v2443 = vadd.f32 0.0, %v2442
      %v2444 = vpop.f32.mrb[0].mxu0
      %2445 = vmatprep.mubr.f32.mxu0 0.0
      %2446 = vmatmul.mubr.f32.gmra.mrb[0].mxu0 %v2317
      %v2447 = vpop.f32.mrb[0].mxu0
      %v2448 = vadd.f32 0.0, %v2447
      %v2449 = vpop.f32.mrb[0].mxu0
      %2450 = vmatprep.mubr.f32.mxu0 0.0
      %2451 = vmatmul.mubr.f32.gmra.mrb[0].mxu0 %v2320
      %v2452 = vpop.f32.mrb[0].mxu0
      %v2453 = vadd.f32 0.0, %v2452
      %v2454 = vpop.f32.mrb[0].mxu0
      %2455 = vmatprep.mubr.f32.mxu0 0.0
      %2456 = vmatmul.mubr.f32.gmra.mrb[0].mxu0 %v2323
      %v2457 = vpop.f32.mrb[0].mxu0
      %v2458 = vadd.f32 0.0, %v2457
      %v2459 = vpop.f32.mrb[0].mxu0
      %2460 = vmatprep.mubr.f32.mxu0 0.0
      %2461 = vmatmul.mubr.f32.gmra.mrb[0].mxu0 %v2326
      %v2462 = vpop.f32.mrb[0].mxu0
      %v2463 = vadd.f32 0.0, %v2462
      %v2464 = vpop.f32.mrb[0].mxu0
      %2465 = vmatprep.mubr.f32.mxu0 0.0
      %2466 = vmatmul.mubr.f32.gmra.mrb[0].mxu0 %v2329
      %v2467 = vpop.f32.mrb[0].mxu0
      %v2468 = vadd.f32 0.0, %v2467
      %v2469 = vpop.f32.mrb[0].mxu0
      %2470 = vmatprep.mubr.f32.mxu0 0.0
      %2471 = vmatmul.mubr.f32.gmra.mrb[0].mxu0 %v2332
      %v2472 = vpop.f32.mrb[0].mxu0
      %v2473 = vadd.f32 0.0, %v2472
      %v2474 = vpop.f32.mrb[0].mxu0
      %2475 = vmatprep.mubr.f32.mxu0 0.0
      %2476 = vmatmul.mubr.f32.gmra.mrb[0].mxu0 %v2335
      %v2477 = vpop.f32.mrb[0].mxu0
      %v2478 = vadd.f32 0.0, %v2477
      %v2479 = vpop.f32.mrb[0].mxu0
      %2480 = vmatprep.mubr.f32.mxu0 0.0
      %2481 = vmatmul.mubr.f32.gmra.mrb[0].mxu0 %v2338
      %v2482 = vpop.f32.mrb[0].mxu0
      %v2483 = vadd.f32 0.0, %v2482
      %v2484 = vpop.f32.mrb[0].mxu0
      %2485 = vmatprep.mubr.f32.mxu0 0.0
      %2486 = vmatmul.mubr.f32.gmra.mrb[0].mxu0 %v2341
      %v2487 = vpop.f32.mrb[0].mxu0
      %v2488 = vadd.f32 0.0, %v2487
      %v2489 = vpop.f32.mrb[0].mxu0
      %2490 = vdwg.mxu0
      %v2491 = vadd.f32 %v2261, %v2413
      %v2492 = vadd.f32 %v2262, %v2418
      %v2493 = vadd.f32 %v2263, %v2423
      %v2494 = vadd.f32 %v2264, %v2428
      %v2495 = vadd.f32 %v2265, %v2433
      %v2496 = vadd.f32 %v2266, %v2438
      %v2497 = vadd.f32 %v2267, %v2443
      %v2498 = vadd.f32 %v2268, %v2448
      %v2499 = vadd.f32 %v2269, %v2453
      %v2500 = vadd.f32 %v2270, %v2458
      %v2501 = vadd.f32 %v2271, %v2463
      %v2502 = vadd.f32 %v2272, %v2468
      %v2503 = vadd.f32 %v2273, %v2473
      %v2504 = vadd.f32 %v2274, %v2478
      %v2505 = vadd.f32 %v2275, %v2483
      %v2506 = vadd.f32 %v2276, %v2488
      %v2507 = vld [vmem:[%s4] sm:$0x1]
      %v2509 = vlaneseq
      %v2510 = vshrl.u32 %v2509, 7
      %v2511 = vsub.s32 0, %v2510
      %v2512 = vrot.slane %v2507, %v2511
      %v2514 = vadd.f32 %v2491, %v2512
      %v2515 = vadd.f32 %v2492, %v2512
      %v2516 = vadd.f32 %v2493, %v2512
      %v2517 = vadd.f32 %v2494, %v2512
      %v2518 = vadd.f32 %v2495, %v2512
      %v2519 = vadd.f32 %v2496, %v2512
      %v2520 = vadd.f32 %v2497, %v2512
      %v2521 = vadd.f32 %v2498, %v2512
      %v2522 = vadd.f32 %v2499, %v2512
      %v2523 = vadd.f32 %v2500, %v2512
      %v2524 = vadd.f32 %v2501, %v2512
      %v2525 = vadd.f32 %v2502, %v2512
      %v2526 = vadd.f32 %v2503, %v2512
      %v2527 = vadd.f32 %v2504, %v2512
      %v2528 = vadd.f32 %v2505, %v2512
      %v2529 = vadd.f32 %v2506, %v2512
      %v2530 = vxor.u32 %v2514, 2147483648
      %v2531 = vxor.u32 %v2515, 2147483648
      %v2532 = vxor.u32 %v2516, 2147483648
      %v2533 = vxor.u32 %v2517, 2147483648
      %v2534 = vxor.u32 %v2518, 2147483648
      %v2535 = vxor.u32 %v2519, 2147483648
      %v2536 = vxor.u32 %v2520, 2147483648
      %v2537 = vxor.u32 %v2521, 2147483648
      %v2538 = vxor.u32 %v2522, 2147483648
      %v2539 = vxor.u32 %v2523, 2147483648
      %v2540 = vxor.u32 %v2524, 2147483648
      %v2541 = vxor.u32 %v2525, 2147483648
      %v2542 = vxor.u32 %v2526, 2147483648
      %v2543 = vxor.u32 %v2527, 2147483648
      %v2544 = vxor.u32 %v2528, 2147483648
      %v2545 = vxor.u32 %v2529, 2147483648
      %v2546 = vmul.f32 %v2530, 1.442695
      %v2547 = vpow.pop %v2546
      %v2548 = vmul.f32 %v2531, 1.442695
      %v2549 = vpow.pop %v2548
      %v2550 = vmul.f32 %v2532, 1.442695
      %v2551 = vpow.pop %v2550
      %v2552 = vmul.f32 %v2533, 1.442695
      %v2553 = vpow.pop %v2552
      %v2554 = vmul.f32 %v2534, 1.442695
      %v2555 = vpow.pop %v2554
      %v2556 = vmul.f32 %v2535, 1.442695
      %v2557 = vpow.pop %v2556
      %v2558 = vmul.f32 %v2536, 1.442695
      %v2559 = vpow.pop %v2558
      %v2560 = vmul.f32 %v2537, 1.442695
      %v2561 = vpow.pop %v2560
      %v2562 = vmul.f32 %v2538, 1.442695
      %v2563 = vpow.pop %v2562
      %v2564 = vmul.f32 %v2539, 1.442695
      %v2565 = vpow.pop %v2564
      %v2566 = vmul.f32 %v2540, 1.442695
      %v2567 = vpow.pop %v2566
      %v2568 = vmul.f32 %v2541, 1.442695
      %v2569 = vpow.pop %v2568
      %v2570 = vmul.f32 %v2542, 1.442695
      %v2571 = vpow.pop %v2570
      %v2572 = vmul.f32 %v2543, 1.442695
      %v2573 = vpow.pop %v2572
      %v2574 = vmul.f32 %v2544, 1.442695
      %v2575 = vpow.pop %v2574
      %v2576 = vmul.f32 %v2545, 1.442695
      %v2577 = vpow.pop %v2576
      %v2578 = vadd.f32 %v2547, 1.0
      %v2579 = vadd.f32 %v2549, 1.0
      %v2580 = vadd.f32 %v2551, 1.0
      %v2581 = vadd.f32 %v2553, 1.0
      %v2582 = vadd.f32 %v2555, 1.0
      %v2583 = vadd.f32 %v2557, 1.0
      %v2584 = vadd.f32 %v2559, 1.0
      %v2585 = vadd.f32 %v2561, 1.0
      %v2586 = vadd.f32 %v2563, 1.0
      %v2587 = vadd.f32 %v2565, 1.0
      %v2588 = vadd.f32 %v2567, 1.0
      %v2589 = vadd.f32 %v2569, 1.0
      %v2590 = vadd.f32 %v2571, 1.0
      %v2591 = vadd.f32 %v2573, 1.0
      %v2592 = vadd.f32 %v2575, 1.0
      %v2593 = vadd.f32 %v2577, 1.0
      %v2594 = vrcp.pop %v2578
      %v2595 = vmul.f32 1.0, %v2594
      %v2596 = vrcp.pop %v2579
      %v2597 = vmul.f32 1.0, %v2596
      %v2598 = vrcp.pop %v2580
      %v2599 = vmul.f32 1.0, %v2598
      %v2600 = vrcp.pop %v2581
      %v2601 = vmul.f32 1.0, %v2600
      %v2602 = vrcp.pop %v2582
      %v2603 = vmul.f32 1.0, %v2602
      %v2604 = vrcp.pop %v2583
      %v2605 = vmul.f32 1.0, %v2604
      %v2606 = vrcp.pop %v2584
      %v2607 = vmul.f32 1.0, %v2606
      %v2608 = vrcp.pop %v2585
      %v2609 = vmul.f32 1.0, %v2608
      %v2610 = vrcp.pop %v2586
      %v2611 = vmul.f32 1.0, %v2610
      %v2612 = vrcp.pop %v2587
      %v2613 = vmul.f32 1.0, %v2612
      %v2614 = vrcp.pop %v2588
      %v2615 = vmul.f32 1.0, %v2614
      %v2616 = vrcp.pop %v2589
      %v2617 = vmul.f32 1.0, %v2616
      %v2618 = vrcp.pop %v2590
      %v2619 = vmul.f32 1.0, %v2618
      %v2620 = vrcp.pop %v2591
      %v2621 = vmul.f32 1.0, %v2620
      %v2622 = vrcp.pop %v2592
      %v2623 = vmul.f32 1.0, %v2622
      %v2624 = vrcp.pop %v2593
      %v2625 = vmul.f32 1.0, %v2624
      %v2626 = vmul.f32 %v2514, %v2595
      %v2627 = vmul.f32 %v2515, %v2597
      %v2628 = vmul.f32 %v2516, %v2599
      %v2629 = vmul.f32 %v2517, %v2601
      %v2630 = vmul.f32 %v2518, %v2603
      %v2631 = vmul.f32 %v2519, %v2605
      %v2632 = vmul.f32 %v2520, %v2607
      %v2633 = vmul.f32 %v2521, %v2609
      %v2634 = vmul.f32 %v2522, %v2611
      %v2635 = vmul.f32 %v2523, %v2613
      %v2636 = vmul.f32 %v2524, %v2615
      %v2637 = vmul.f32 %v2525, %v2617
      %v2638 = vmul.f32 %v2526, %v2619
      %v2639 = vmul.f32 %v2527, %v2621
      %v2640 = vmul.f32 %v2528, %v2623
      %v2641 = vmul.f32 %v2529, %v2625
      %vm2642 = vcmask 64512
      %2643 = vst.msk [vmem:[%s391] sm:$0xff] %vm2642, %v2626
      %2644 = vst.msk [vmem:[%s391 + $0x8] sm:$0xff] %vm2642, %v2627
      %2645 = vst.msk [vmem:[%s391 + $0x10] sm:$0xff] %vm2642, %v2628
      %2646 = vst.msk [vmem:[%s391 + $0x18] sm:$0xff] %vm2642, %v2629
      %2647 = vst.msk [vmem:[%s391 + $0x20] sm:$0xff] %vm2642, %v2630
      %2648 = vst.msk [vmem:[%s391 + $0x28] sm:$0xff] %vm2642, %v2631
      %2649 = vst.msk [vmem:[%s391 + $0x30] sm:$0xff] %vm2642, %v2632
      %2650 = vst.msk [vmem:[%s391 + $0x38] sm:$0xff] %vm2642, %v2633
      %2651 = vst.msk [vmem:[%s391 + $0x40] sm:$0xff] %vm2642, %v2634
      %2652 = vst.msk [vmem:[%s391 + $0x48] sm:$0xff] %vm2642, %v2635
      %2653 = vst.msk [vmem:[%s391 + $0x50] sm:$0xff] %vm2642, %v2636
      %2654 = vst.msk [vmem:[%s391 + $0x58] sm:$0xff] %vm2642, %v2637
      %2655 = vst.msk [vmem:[%s391 + $0x60] sm:$0xff] %vm2642, %v2638
      %2656 = vst.msk [vmem:[%s391 + $0x68] sm:$0xff] %vm2642, %v2639
      %2657 = vst.msk [vmem:[%s391 + $0x70] sm:$0xff] %vm2642, %v2640
      %2658 = vst.msk [vmem:[%s391 + $0x78] sm:$0xff] %vm2642, %v2641
      %s2659 = smul.u32 8, %s21
      %p2660 = scmp.lt.s32.totalorder %s20, 1
      %s2661 = scalar_select %p2660, %s20, 1
      %p2662 = scmp.lt.s32.totalorder %s2659, 15
      %s2663 = scalar_select %p2662, %s2659, 15
      %s2664 = smul.addr %s2663, 2
      %s2665 = smul.addr %s2661, 32
      %s2666 = sadd.s32 %s2664, %s2665
      %s2667 = smul.addr %s2666, 8
      %s2668 = scalar_lea.vmem %s5, %s2667
      // Predicated region
      $region41: #{tpu_custom_call.1} parent=39 // pred_check
        %p2669 = pneg %p190
      $region42: #{tpu_custom_call.1} parent=39 // pred_check_branch
        %2671 = sbr.rel (%p2669) target = $region44
      $region43: #{tpu_custom_call.1} parent=39 // pred_region
        %s2672 = smul.u32 8, %s21
      $region44: #{tpu_custom_call.1} parent=39 // pred_fallthru
        _
    $region40: #{tpu_custom_call.1} parent=5 // pred_fallthru
      _
    %p2673 = scmp.le.s32.totalorder 2, %s11
    // Predicated region
    $region45: #{tpu_custom_call.1} parent=5 // pred_check
      %p2674 = pneg %p2673
    $region46: #{tpu_custom_call.1} parent=5 // pred_check_branch
      %2676 = sbr.rel (%p2674) target = $region48
    $region47: #{tpu_custom_call.1} parent=5 // pred_region
      %s2677 = ssub.s32 %s11, 2
      // Predicated region
      $region49: #{tpu_custom_call.1} parent=47 // pred_check
        %p2678 = pneg %p196
      $region50: #{tpu_custom_call.1} parent=47 // pred_check_branch
        %2680 = sbr.rel (%p2678) target = $region52
      $region51: #{tpu_custom_call.1} parent=47 // pred_region
        %s2681 = smul.u32 8, %s23
        %p2682 = scmp.lt.s32.totalorder %s22, 1
        %s2683 = scalar_select %p2682, %s22, 1
        %p2684 = scmp.lt.s32.totalorder %s2681, 15
        %s2685 = scalar_select %p2684, %s2681, 15
        %s2686 = smul.addr %s2685, 2
        %s2687 = smul.addr %s2683, 32
        %s2688 = sadd.s32 %s2686, %s2687
        %s2689 = smul.addr %s2688, 8
        %s2690 = scalar_lea.vmem %s5, %s2689
      $region52: #{tpu_custom_call.1} parent=47 // pred_fallthru
        _
    $region48: #{tpu_custom_call.1} parent=5 // pred_fallthru
      _
  $region6: #{tpu_custom_call.1} parent=0 // loop_footer
    %s15 = sadd.s32 1, %s11
  $region7: #{tpu_custom_call.1} parent=0 // loop_footer_branch
    %10 = sbr.rel target = $region3
  $region8: #{tpu_custom_call.1} parent=0 // loop_exit
    _

</llo_original>
